<compile_context>
chip_gen: v7x
topology: tpu7x:2x2x1
jax: 0.10.0
libtpu: 0.0.40
codegen_flags: <defaults>
</compile_context>

<pallas_src>
import functools

import jax
import jax.numpy as jnp
from jax.experimental import pallas as pl
from jax.experimental.pallas import tpu as pltpu


def _round_up(x, m):
    return ((x + m - 1) // m) * m


def _conv_taps_kernel(xm_ref, xh_ref, w_ref, b_ref, o_ref, *, K, Wp):
    # xm_ref: (Cin, blk_q)        bf16  main flat-spatial tile
    # xh_ref: (Cin, halo_pad)     bf16  halo (start of the next tile)
    # w_ref : (K*K, Cout_p, Cin)  bf16  per-tap weights (resident across grid)
    # b_ref : (Cout_p, 1)         f32   bias
    # o_ref : (Cout_p, blk_q)     f32   lane-dense output tile
    blk_q = o_ref.shape[-1]
    x = jnp.concatenate([xm_ref[...], xh_ref[...]], axis=-1)  # (Cin, blk_q+halo)
    acc = jnp.zeros(o_ref.shape, jnp.float32)
    for kh in range(K):
        for kw in range(K):
            t = kh * K + kw
            off = kh * Wp + kw                     # static flat tap offset
            tap = x[:, off:off + blk_q]            # lane-shifted slice (XLU)
            acc = acc + jnp.dot(w_ref[t], tap,
                                preferred_element_type=jnp.float32)
    o_ref[...] = (acc + b_ref[...]).astype(o_ref.dtype)


def conv_norm_forward(x_nchw, weight_oihw, bias, kernel_size, stride=1,
                      vmem_stream_budget=8 * 1024 * 1024):
    """Forward of ConvNorm: ZeroPad2d(k//2) then Conv2d(..., bias=True)."""
    N, Cin, H, W = x_nchw.shape
    Cout = weight_oihw.shape[0]
    K = kernel_size
    pad = K // 2
    Hp, Wp = H + 2 * pad, W + 2 * pad
    H1 = Hp - K + 1                    # stride-1 output height
    W1 = Wp - K + 1                    # stride-1 output width

    LANE = 128
    Cout_p = _round_up(Cout, 8)        # full-sublane (unmasked) output stores

    Q = H1 * Wp                        # full-width flat output length
    halo = (K - 1) * Wp + (K - 1)      # extra lanes needed past a tile
    halo_pad = _round_up(max(halo, 1), LANE)

    # VMEM-budget-derived lane tile: per-lane bytes of the double-buffered
    # streams + single-buffered in-kernel temps, with VMEM sublane padding.
    def spad(c, nbytes):               # sublanes occupied for c rows of dtype
        per = 32 // nbytes
        return _round_up(max(c, 1), per)
    per_lane = (2 * spad(Cin, 2) * 2        # input stream, 2x buffered, bf16
                + 2 * spad(Cout_p, 4) * 4   # output stream, 2x buffered, f32
                + 2 * spad(Cin, 2) * 2      # concat + tap temps, bf16
                + spad(Cout_p, 4) * 4)      # f32 accumulator
    blk_q = max(vmem_stream_budget // per_lane, halo_pad)
    blk_q = min(blk_q, _round_up(Q, halo_pad))        # no bigger than needed
    blk_q = (blk_q // halo_pad) * halo_pad            # multiple of halo (and 128)
    Q_pad = _round_up(Q, blk_q)
    T = Q_pad // blk_q
    Lf = Q_pad + halo_pad                             # flat length incl. halo read
    m = blk_q // halo_pad

    # ZeroPad2d(pad), flatten spatial (metadata reshape), bf16 stream, pad tail.
    xp = jnp.pad(x_nchw, ((0, 0), (0, 0), (pad, pad), (pad, pad)))
    xf = xp.reshape(N, Cin, Hp * Wp).astype(jnp.bfloat16)
    xf = jnp.pad(xf, ((0, 0), (0, 0), (0, Lf - Hp * Wp)))

    # Weights (Cout, Cin, K, K) -> (K*K, Cout_p, Cin) bf16; bias -> (Cout_p, 1) f32.
    w_t = jnp.transpose(weight_oihw, (2, 3, 0, 1)).reshape(K * K, Cout, Cin)
    w_t = jnp.pad(w_t, ((0, 0), (0, Cout_p - Cout), (0, 0))).astype(jnp.bfloat16)
    b2 = jnp.pad(bias, (0, Cout_p - Cout)).reshape(Cout_p, 1).astype(jnp.float32)

    kern = functools.partial(_conv_taps_kernel, K=K, Wp=Wp)

    out = pl.pallas_call(
        kern,
        out_shape=jax.ShapeDtypeStruct((N, Cout_p, Q_pad), x_nchw.dtype),
        grid_spec=pltpu.PrefetchScalarGridSpec(
            num_scalar_prefetch=0,
            grid=(N, T),
            in_specs=[
                # main flat-spatial tile (batch dim squeezed out)
                pl.BlockSpec((None, Cin, blk_q), lambda n, s: (n, 0, s)),
                # halo tile = start of the next blk_q chunk
                pl.BlockSpec((None, Cin, halo_pad),
                             lambda n, s: (n, 0, (s + 1) * m)),
                # resident per-tap weights + bias
                pl.BlockSpec((K * K, Cout_p, Cin), lambda n, s: (0, 0, 0)),
                pl.BlockSpec((Cout_p, 1), lambda n, s: (0, 0)),
            ],
            out_specs=pl.BlockSpec((None, Cout_p, blk_q),
                                   lambda n, s: (n, 0, s)),
        ),
        compiler_params=pltpu.CompilerParams(
            dimension_semantics=("parallel", "parallel")),
    )(xf, xf, w_t, b2)

    # Crop channel/lane padding, un-flatten, drop wrap-around columns,
    # then apply stride by subsampling the stride-1 result.
    out = out[:, :Cout, :Q].reshape(N, Cout, H1, Wp)[:, :, :, :W1]
    if stride != 1:
        out = out[:, :, ::stride, ::stride]
    return out


def _reference(x_nchw, weight_oihw, bias, kernel_size, stride=1):
    pad = kernel_size // 2
    out = jax.lax.conv_general_dilated(
        x_nchw, weight_oihw,
        window_strides=(stride, stride),
        padding=[(pad, pad), (pad, pad)],
        dimension_numbers=("NCHW", "OIHW", "NCHW"),
    )
    return out + bias[None, :, None, None]


if __name__ == "__main__":
    # Mirrors f1 = torch.rand((1, 3, H, W*2)): 3 input channels, width doubled.
    N, Cin, H, W = 2, 3, 16, 32
    Cout, K = 8, 3

    key = jax.random.PRNGKey(0)
    kx, kw, kb = jax.random.split(key, 3)
    x = jax.random.uniform(kx, (N, Cin, H, W), dtype=jnp.float32)
    # Deterministic synthetic Conv2d parameters (OIHW weight, bias).
    weight = jax.random.normal(kw, (Cout, Cin, K, K), dtype=jnp.float32) * 0.1
    bias = jax.random.normal(kb, (Cout,), dtype=jnp.float32) * 0.1

    fwd = jax.jit(functools.partial(conv_norm_forward, kernel_size=K, stride=1))
    out = jax.block_until_ready(fwd(x, weight, bias))

    ref = _reference(x, weight, bias, K, stride=1)
    assert out.shape == ref.shape, (out.shape, ref.shape)
    # bf16 streamed operands with f32 accumulation -> relaxed tolerance.
    assert jnp.allclose(out, ref, atol=2e-2, rtol=2e-2), "mismatch vs reference conv"

    print("KERNEL_OK")
</pallas_src>

<mosaic_0001>
module attributes {stable_mosaic.version = 11 : i64} {
  func.func @_conv_taps_kernel(%arg0: i32, %arg1: i32, %arg2: memref<1x3x640xbf16, #tpu.memory_space<vmem>>, %arg3: memref<1x3x128xbf16, #tpu.memory_space<vmem>>, %arg4: memref<9x8x3xbf16, #tpu.memory_space<vmem>>, %arg5: memref<8x1xf32, #tpu.memory_space<vmem>>, %arg6: memref<1x8x640xf32, #tpu.memory_space<vmem>>) attributes {dimension_semantics = [#tpu.dimension_semantics<parallel>, #tpu.dimension_semantics<parallel>], iteration_bounds = array<i64: 2, 1>, scalar_prefetch = 0 : i64, scratch_operands = 0 : i64, tpu.core_type = #tpu.core_type<tc>, window_params = [{transform_indices = @transform_0, window_bounds = array<i64: 1, 3, 640>}, {transform_indices = @transform_1, window_bounds = array<i64: 1, 3, 128>}, {pipeline_mode = #tpu.pipeline_mode<synchronous>, transform_indices = @transform_2, window_bounds = array<i64: 9, 8, 3>}, {pipeline_mode = #tpu.pipeline_mode<synchronous>, transform_indices = @transform_3, window_bounds = array<i64: 8, 1>}, {transform_indices = @transform_4, window_bounds = array<i64: 1, 8, 640>}]} {
    %c0 = arith.constant 0 : index
    %c0_0 = arith.constant 0 : index
    %c0_1 = arith.constant 0 : index
    %0 = vector.load %arg2[%c0, %c0_0, %c0_1] : memref<1x3x640xbf16, #tpu.memory_space<vmem>>, vector<1x3x640xbf16>
    %1 = vector.shape_cast %0 : vector<1x3x640xbf16> to vector<3x640xbf16>
    %c0_2 = arith.constant 0 : index
    %c0_3 = arith.constant 0 : index
    %c0_4 = arith.constant 0 : index
    %2 = vector.load %arg3[%c0_2, %c0_3, %c0_4] : memref<1x3x128xbf16, #tpu.memory_space<vmem>>, vector<1x3x128xbf16>
    %3 = vector.shape_cast %2 : vector<1x3x128xbf16> to vector<3x128xbf16>
    %4 = tpu.concatenate %1, %3 in 1 : vector<3x640xbf16>, vector<3x128xbf16> -> vector<3x768xbf16>
    %cst = arith.constant 0.000000e+00 : f32
    %5 = vector.broadcast %cst : f32 to vector<8x640xf32>
    %6 = vector.extract_strided_slice %4 {offsets = [0, 0], sizes = [3, 640], strides = [1, 1]} : vector<3x768xbf16> to vector<3x640xbf16>
    %c0_5 = arith.constant 0 : index
    %c0_6 = arith.constant 0 : index
    %c0_7 = arith.constant 0 : index
    %7 = vector.load %arg4[%c0_5, %c0_6, %c0_7] : memref<9x8x3xbf16, #tpu.memory_space<vmem>>, vector<1x8x3xbf16>
    %8 = vector.shape_cast %7 : vector<1x8x3xbf16> to vector<8x3xbf16>
    %cst_8 = arith.constant dense<0.000000e+00> : vector<8x640xf32>
    %9 = tpu.matmul %8, %6, %cst_8 {dimension_numbers = #tpu.dot_dimension_numbers<[1], [0], [0], [1], [0, 0, 1, 1], [], []>} : vector<8x3xbf16>, vector<3x640xbf16>, vector<8x640xf32> -> vector<8x640xf32>
    %10 = arith.addf %5, %9 : vector<8x640xf32>
    %11 = vector.extract_strided_slice %4 {offsets = [0, 1], sizes = [3, 640], strides = [1, 1]} : vector<3x768xbf16> to vector<3x640xbf16>
    %c1 = arith.constant 1 : index
    %c0_9 = arith.constant 0 : index
    %c0_10 = arith.constant 0 : index
    %12 = vector.load %arg4[%c1, %c0_9, %c0_10] : memref<9x8x3xbf16, #tpu.memory_space<vmem>>, vector<1x8x3xbf16>
    %13 = vector.shape_cast %12 : vector<1x8x3xbf16> to vector<8x3xbf16>
    %cst_11 = arith.constant dense<0.000000e+00> : vector<8x640xf32>
    %14 = tpu.matmul %13, %11, %cst_11 {dimension_numbers = #tpu.dot_dimension_numbers<[1], [0], [0], [1], [0, 0, 1, 1], [], []>} : vector<8x3xbf16>, vector<3x640xbf16>, vector<8x640xf32> -> vector<8x640xf32>
    %15 = arith.addf %10, %14 : vector<8x640xf32>
    %16 = vector.extract_strided_slice %4 {offsets = [0, 2], sizes = [3, 640], strides = [1, 1]} : vector<3x768xbf16> to vector<3x640xbf16>
    %c2 = arith.constant 2 : index
    %c0_12 = arith.constant 0 : index
    %c0_13 = arith.constant 0 : index
    %17 = vector.load %arg4[%c2, %c0_12, %c0_13] : memref<9x8x3xbf16, #tpu.memory_space<vmem>>, vector<1x8x3xbf16>
    %18 = vector.shape_cast %17 : vector<1x8x3xbf16> to vector<8x3xbf16>
    %cst_14 = arith.constant dense<0.000000e+00> : vector<8x640xf32>
    %19 = tpu.matmul %18, %16, %cst_14 {dimension_numbers = #tpu.dot_dimension_numbers<[1], [0], [0], [1], [0, 0, 1, 1], [], []>} : vector<8x3xbf16>, vector<3x640xbf16>, vector<8x640xf32> -> vector<8x640xf32>
    %20 = arith.addf %15, %19 : vector<8x640xf32>
    %21 = vector.extract_strided_slice %4 {offsets = [0, 34], sizes = [3, 640], strides = [1, 1]} : vector<3x768xbf16> to vector<3x640xbf16>
    %c3 = arith.constant 3 : index
    %c0_15 = arith.constant 0 : index
    %c0_16 = arith.constant 0 : index
    %22 = vector.load %arg4[%c3, %c0_15, %c0_16] : memref<9x8x3xbf16, #tpu.memory_space<vmem>>, vector<1x8x3xbf16>
    %23 = vector.shape_cast %22 : vector<1x8x3xbf16> to vector<8x3xbf16>
    %cst_17 = arith.constant dense<0.000000e+00> : vector<8x640xf32>
    %24 = tpu.matmul %23, %21, %cst_17 {dimension_numbers = #tpu.dot_dimension_numbers<[1], [0], [0], [1], [0, 0, 1, 1], [], []>} : vector<8x3xbf16>, vector<3x640xbf16>, vector<8x640xf32> -> vector<8x640xf32>
    %25 = arith.addf %20, %24 : vector<8x640xf32>
    %26 = vector.extract_strided_slice %4 {offsets = [0, 35], sizes = [3, 640], strides = [1, 1]} : vector<3x768xbf16> to vector<3x640xbf16>
    %c4 = arith.constant 4 : index
    %c0_18 = arith.constant 0 : index
    %c0_19 = arith.constant 0 : index
    %27 = vector.load %arg4[%c4, %c0_18, %c0_19] : memref<9x8x3xbf16, #tpu.memory_space<vmem>>, vector<1x8x3xbf16>
    %28 = vector.shape_cast %27 : vector<1x8x3xbf16> to vector<8x3xbf16>
    %cst_20 = arith.constant dense<0.000000e+00> : vector<8x640xf32>
    %29 = tpu.matmul %28, %26, %cst_20 {dimension_numbers = #tpu.dot_dimension_numbers<[1], [0], [0], [1], [0, 0, 1, 1], [], []>} : vector<8x3xbf16>, vector<3x640xbf16>, vector<8x640xf32> -> vector<8x640xf32>
    %30 = arith.addf %25, %29 : vector<8x640xf32>
    %31 = vector.extract_strided_slice %4 {offsets = [0, 36], sizes = [3, 640], strides = [1, 1]} : vector<3x768xbf16> to vector<3x640xbf16>
    %c5 = arith.constant 5 : index
    %c0_21 = arith.constant 0 : index
    %c0_22 = arith.constant 0 : index
    %32 = vector.load %arg4[%c5, %c0_21, %c0_22] : memref<9x8x3xbf16, #tpu.memory_space<vmem>>, vector<1x8x3xbf16>
    %33 = vector.shape_cast %32 : vector<1x8x3xbf16> to vector<8x3xbf16>
    %cst_23 = arith.constant dense<0.000000e+00> : vector<8x640xf32>
    %34 = tpu.matmul %33, %31, %cst_23 {dimension_numbers = #tpu.dot_dimension_numbers<[1], [0], [0], [1], [0, 0, 1, 1], [], []>} : vector<8x3xbf16>, vector<3x640xbf16>, vector<8x640xf32> -> vector<8x640xf32>
    %35 = arith.addf %30, %34 : vector<8x640xf32>
    %36 = vector.extract_strided_slice %4 {offsets = [0, 68], sizes = [3, 640], strides = [1, 1]} : vector<3x768xbf16> to vector<3x640xbf16>
    %c6 = arith.constant 6 : index
    %c0_24 = arith.constant 0 : index
    %c0_25 = arith.constant 0 : index
    %37 = vector.load %arg4[%c6, %c0_24, %c0_25] : memref<9x8x3xbf16, #tpu.memory_space<vmem>>, vector<1x8x3xbf16>
    %38 = vector.shape_cast %37 : vector<1x8x3xbf16> to vector<8x3xbf16>
    %cst_26 = arith.constant dense<0.000000e+00> : vector<8x640xf32>
    %39 = tpu.matmul %38, %36, %cst_26 {dimension_numbers = #tpu.dot_dimension_numbers<[1], [0], [0], [1], [0, 0, 1, 1], [], []>} : vector<8x3xbf16>, vector<3x640xbf16>, vector<8x640xf32> -> vector<8x640xf32>
    %40 = arith.addf %35, %39 : vector<8x640xf32>
    %41 = vector.extract_strided_slice %4 {offsets = [0, 69], sizes = [3, 640], strides = [1, 1]} : vector<3x768xbf16> to vector<3x640xbf16>
    %c7 = arith.constant 7 : index
    %c0_27 = arith.constant 0 : index
    %c0_28 = arith.constant 0 : index
    %42 = vector.load %arg4[%c7, %c0_27, %c0_28] : memref<9x8x3xbf16, #tpu.memory_space<vmem>>, vector<1x8x3xbf16>
    %43 = vector.shape_cast %42 : vector<1x8x3xbf16> to vector<8x3xbf16>
    %cst_29 = arith.constant dense<0.000000e+00> : vector<8x640xf32>
    %44 = tpu.matmul %43, %41, %cst_29 {dimension_numbers = #tpu.dot_dimension_numbers<[1], [0], [0], [1], [0, 0, 1, 1], [], []>} : vector<8x3xbf16>, vector<3x640xbf16>, vector<8x640xf32> -> vector<8x640xf32>
    %45 = arith.addf %40, %44 : vector<8x640xf32>
    %46 = vector.extract_strided_slice %4 {offsets = [0, 70], sizes = [3, 640], strides = [1, 1]} : vector<3x768xbf16> to vector<3x640xbf16>
    %c8 = arith.constant 8 : index
    %c0_30 = arith.constant 0 : index
    %c0_31 = arith.constant 0 : index
    %47 = vector.load %arg4[%c8, %c0_30, %c0_31] : memref<9x8x3xbf16, #tpu.memory_space<vmem>>, vector<1x8x3xbf16>
    %48 = vector.shape_cast %47 : vector<1x8x3xbf16> to vector<8x3xbf16>
    %cst_32 = arith.constant dense<0.000000e+00> : vector<8x640xf32>
    %49 = tpu.matmul %48, %46, %cst_32 {dimension_numbers = #tpu.dot_dimension_numbers<[1], [0], [0], [1], [0, 0, 1, 1], [], []>} : vector<8x3xbf16>, vector<3x640xbf16>, vector<8x640xf32> -> vector<8x640xf32>
    %50 = arith.addf %45, %49 : vector<8x640xf32>
    %c0_33 = arith.constant 0 : index
    %c0_34 = arith.constant 0 : index
    %51 = vector.load %arg5[%c0_33, %c0_34] : memref<8x1xf32, #tpu.memory_space<vmem>>, vector<8x1xf32>
    %52 = vector.broadcast %51 : vector<8x1xf32> to vector<8x640xf32>
    %53 = arith.addf %50, %52 : vector<8x640xf32>
    %c0_35 = arith.constant 0 : index
    %c0_36 = arith.constant 0 : index
    %c0_37 = arith.constant 0 : index
    %54 = vector.load %arg6[%c0_35, %c0_36, %c0_37] : memref<1x8x640xf32, #tpu.memory_space<vmem>>, vector<1x8x640xf32>
    %55 = vector.shape_cast %54 : vector<1x8x640xf32> to vector<8x640xf32>
    %56 = vector.shape_cast %53 : vector<8x640xf32> to vector<1x8x640xf32>
    tpu.vector_store %arg6[%c0_35, %c0_36, %c0_37], %56 {strides = array<i32>} : memref<1x8x640xf32, #tpu.memory_space<vmem>>, vector<1x8x640xf32>,
    return
  }
  func.func @transform_0(%arg0: i32, %arg1: i32) -> (i32, i32, i32) {
    %c0_i32 = arith.constant 0 : i32
    %c0_i32_0 = arith.constant 0 : i32
    return %arg0, %c0_i32, %arg1 : i32, i32, i32
  }
  func.func @transform_1(%arg0: i32, %arg1: i32) -> (i32, i32, i32) {
    %c1_i32 = arith.constant 1 : i32
    %0 = arith.addi %arg1, %c1_i32 : i32
    %c5_i32 = arith.constant 5 : i32
    %1 = arith.muli %0, %c5_i32 : i32
    %c0_i32 = arith.constant 0 : i32
    %c0_i32_0 = arith.constant 0 : i32
    return %arg0, %c0_i32, %1 : i32, i32, i32
  }
  func.func @transform_2(%arg0: i32, %arg1: i32) -> (i32, i32, i32) {
    %c0_i32 = arith.constant 0 : i32
    %c0_i32_0 = arith.constant 0 : i32
    %c0_i32_1 = arith.constant 0 : i32
    %c0_i32_2 = arith.constant 0 : i32
    return %c0_i32, %c0_i32_0, %c0_i32_1 : i32, i32, i32
  }
  func.func @transform_3(%arg0: i32, %arg1: i32) -> (i32, i32) {
    %c0_i32 = arith.constant 0 : i32
    %c0_i32_0 = arith.constant 0 : i32
    %c0_i32_1 = arith.constant 0 : i32
    return %c0_i32, %c0_i32_0 : i32, i32
  }
  func.func @transform_4(%arg0: i32, %arg1: i32) -> (i32, i32, i32) {
    %c0_i32 = arith.constant 0 : i32
    %c0_i32_0 = arith.constant 0 : i32
    return %arg0, %c0_i32, %arg1 : i32, i32, i32
  }
}

</mosaic_0001>

<llo_original>
// kernel: conv_norm_forward.1
$region0: #{conv_norm_forward.1}
  #allocation0 [shape = 'u32[]', space=smem, size = 0x4, offset = 0x4, fixed_abs, tag = 'smem constant byte address 0x4 - core index']
  #allocation1 [shape = 'u32[144,128]{1,0:T(1,128)}', space=vmem, size = 0x12000, scoped, tag = 'internal scratch']
  %s0 = inlined_call_operand.vmem [shape: bf16[2,3,768], index: 0, kind: input, shape index: {}, may-alias: {0,1}]
  %s1 = inlined_call_operand.vmem [shape: bf16[2,3,768], index: 1, kind: input, shape index: {}, may-alias: {0,1}]
  %s2 = inlined_call_operand.vmem [shape: bf16[9,8,3], index: 2, kind: input, shape index: {}]
  %s3 = inlined_call_operand.vmem [shape: f32[8,1], index: 3, kind: input, shape index: {}]
  %s4 = inlined_call_operand.vmem [shape: f32[2,8,640], index: 4, kind: output, shape index: {}]
  %s5 = sld [smem:[#allocation0]]
  $region49: #{conv_norm_forward.1} parent=0
    _
  %s7 = ssub.s32 1, %s5
  %s8 = scalar_select 0, %s7, %s5
  loop: start=0, step=1, limit=4
  $region2: #{conv_norm_forward.1} parent=0 // loop_pre_header
    _
  $region3: #{conv_norm_forward.1} parent=0 // loop_header
    %s10 = sphi 0, %s14
    %p11 = scmp.ge.s32.totalorder %s10, 4
    %s17 = sphi 0, %s29
    %s18 = sphi 0, %s25
    %s19 = sphi 0, %s17
    %s20 = sphi 0, %s18
    %s21 = sphi 0, %s19
    %s22 = sphi 0, %s20
    %s34 = sphi 0, %s36
    %s37 = sphi 0, %s34
    %s38 = sphi 0, %s37
    %s54 = sphi 0, %s38
    %s66 = sphi 0, %s68
    %s69 = sphi 0, %s66
    %s70 = sphi 0, %s69
    %s86 = sphi 0, %s70
    %s90 = sphi 0, %s90
    %s92 = sphi 0, %s90
    %s93 = sphi 0, %s92
    %s107 = sphi 0, %s93
    %s111 = sphi 0, %s111
    %s113 = sphi 0, %s111
    %s114 = sphi 0, %s113
    %s128 = sphi 0, %s114
    %s136 = sphi 0, %s138
    %s139 = sphi 0, %s136
    %s140 = sphi 0, %s139
    %s156 = sphi 0, %s140
  $region4: #{conv_norm_forward.1} parent=0 // loop_header_branch
    %13 = sbr.rel (%p11) target = $region8
  $region5: #{conv_norm_forward.1} parent=0 // loop_body
    %s15 = ssub.s32 %s10, 1
    %s16 = ssub.s32 %s10, 2
    %s23 = sadd.s32 1, %s18
    %p24 = scmp.ge.s32.totalorder %s23, 1
    %s25 = scalar_select %p24, 0, %s23
    %s26 = sadd.s32 1, %s17
    %s27 = scalar_select %p24, %s26, %s17
    %p28 = scmp.ge.s32.totalorder %s27, 2
    %s29 = scalar_select %p28, 0, %s27
    %s30 = ssub.s32 %s17, %s29
    %s31 = ssub.s32 %s18, %s25
    %s32 = sor.u32 %s30, %s31
    %p33 = scmp.eq.s32.totalorder %s32, 0
    %s35 = sadd.s32 %s34, 1
    %s36 = scalar_select %p33, %s34, %s35
    %p39 = pneg %p33
    %p40 = scmp.eq.s32.totalorder %s10, 1
    %p41 = por %p39, %p40
    %p42 = scmp.ne.s32.totalorder %s34, %s37
    %p43 = scmp.eq.s32.totalorder %s10, 0
    %p44 = por %p42, %p43
    %p45 = scmp.ne.s32.totalorder %s34, %s37
    %p46 = scmp.eq.s32.totalorder %s15, 1
    %p47 = por %p45, %p46
    %p48 = scmp.ne.s32.totalorder %s37, %s38
    %p49 = scmp.eq.s32.totalorder %s15, 0
    %p50 = por %p48, %p49
    %p51 = scmp.ne.s32.totalorder %s37, %s38
    %p52 = scmp.eq.s32.totalorder %s16, 1
    %p53 = por %p51, %p52
    %p55 = scmp.ne.s32.totalorder %s38, %s54
    %p56 = scmp.eq.s32.totalorder %s16, 0
    %p57 = por %p55, %p56
    %s58 = sadd.s32 %s18, 1
    %s59 = smul.u32 %s58, 5
    %s60 = sadd.s32 %s25, 1
    %s61 = smul.u32 %s60, 5
    %s62 = ssub.s32 %s17, %s29
    %s63 = ssub.s32 %s59, %s61
    %s64 = sor.u32 %s62, %s63
    %p65 = scmp.eq.s32.totalorder %s64, 0
    %s67 = sadd.s32 %s66, 1
    %s68 = scalar_select %p65, %s66, %s67
    %p71 = pneg %p65
    %p72 = scmp.eq.s32.totalorder %s10, 1
    %p73 = por %p71, %p72
    %p74 = scmp.ne.s32.totalorder %s66, %s69
    %p75 = scmp.eq.s32.totalorder %s10, 0
    %p76 = por %p74, %p75
    %p77 = scmp.ne.s32.totalorder %s66, %s69
    %p78 = scmp.eq.s32.totalorder %s15, 1
    %p79 = por %p77, %p78
    %p80 = scmp.ne.s32.totalorder %s69, %s70
    %p81 = scmp.eq.s32.totalorder %s15, 0
    %p82 = por %p80, %p81
    %p83 = scmp.ne.s32.totalorder %s69, %s70
    %p84 = scmp.eq.s32.totalorder %s16, 1
    %p85 = por %p83, %p84
    %p87 = scmp.ne.s32.totalorder %s70, %s86
    %p88 = scmp.eq.s32.totalorder %s16, 0
    %p89 = por %p87, %p88
    %s91 = sadd.s32 %s90, 1
    %p94 = scmp.eq.s32.totalorder %s10, 1
    %p95 = scmp.ne.s32.totalorder %s90, %s92
    %p96 = scmp.eq.s32.totalorder %s10, 0
    %p97 = por %p95, %p96
    %p98 = scmp.ne.s32.totalorder %s90, %s92
    %p99 = scmp.eq.s32.totalorder %s15, 1
    %p100 = por %p98, %p99
    %p101 = scmp.ne.s32.totalorder %s92, %s93
    %p102 = scmp.eq.s32.totalorder %s15, 0
    %p103 = por %p101, %p102
    %p104 = scmp.ne.s32.totalorder %s92, %s93
    %p105 = scmp.eq.s32.totalorder %s16, 1
    %p106 = por %p104, %p105
    %p108 = scmp.ne.s32.totalorder %s93, %s107
    %p109 = scmp.eq.s32.totalorder %s16, 0
    %p110 = por %p108, %p109
    %s112 = sadd.s32 %s111, 1
    %p115 = scmp.eq.s32.totalorder %s10, 1
    %p116 = scmp.ne.s32.totalorder %s111, %s113
    %p117 = scmp.eq.s32.totalorder %s10, 0
    %p118 = por %p116, %p117
    %p119 = scmp.ne.s32.totalorder %s111, %s113
    %p120 = scmp.eq.s32.totalorder %s15, 1
    %p121 = por %p119, %p120
    %p122 = scmp.ne.s32.totalorder %s113, %s114
    %p123 = scmp.eq.s32.totalorder %s15, 0
    %p124 = por %p122, %p123
    %p125 = scmp.ne.s32.totalorder %s113, %s114
    %p126 = scmp.eq.s32.totalorder %s16, 1
    %p127 = por %p125, %p126
    %p129 = scmp.ne.s32.totalorder %s114, %s128
    %p130 = scmp.eq.s32.totalorder %s16, 0
    %p131 = por %p129, %p130
    %s132 = ssub.s32 %s17, %s29
    %s133 = ssub.s32 %s18, %s25
    %s134 = sor.u32 %s132, %s133
    %p135 = scmp.eq.s32.totalorder %s134, 0
    %s137 = sadd.s32 %s136, 1
    %s138 = scalar_select %p135, %s136, %s137
    %p141 = pneg %p135
    %p142 = scmp.eq.s32.totalorder %s10, 1
    %p143 = por %p141, %p142
    %p144 = scmp.ne.s32.totalorder %s136, %s139
    %p145 = scmp.eq.s32.totalorder %s10, 0
    %p146 = por %p144, %p145
    %p147 = scmp.ne.s32.totalorder %s136, %s139
    %p148 = scmp.eq.s32.totalorder %s15, 1
    %p149 = por %p147, %p148
    %p150 = scmp.ne.s32.totalorder %s139, %s140
    %p151 = scmp.eq.s32.totalorder %s15, 0
    %p152 = por %p150, %p151
    %p153 = scmp.ne.s32.totalorder %s139, %s140
    %p154 = scmp.eq.s32.totalorder %s16, 1
    %p155 = por %p153, %p154
    %p157 = scmp.ne.s32.totalorder %s140, %s156
    %p158 = scmp.eq.s32.totalorder %s16, 0
    %p159 = por %p157, %p158
    %p160 = scmp.le.s32.totalorder 1, %s10
    %p161 = scmp.lt.s32.totalorder %s10, 3
    %p162 = pnand %p160, %p161
    %p163 = pneg %p162
    // Predicated region
    $region9: #{conv_norm_forward.1} parent=5 // pred_check
      _
    $region10: #{conv_norm_forward.1} parent=5 // pred_check_branch
      %165 = sbr.rel (%p162) target = $region12
    $region11: #{conv_norm_forward.1} parent=5 // pred_region
      %s166 = ssub.s32 %s10, 1
      // Predicated region
      $region13: #{conv_norm_forward.1} parent=11 // pred_check
        %p167 = pneg %p103
      $region14: #{conv_norm_forward.1} parent=11 // pred_check_branch
        %169 = sbr.rel (%p167) target = $region16
      $region15: #{conv_norm_forward.1} parent=11 // pred_region
        _
      $region16: #{conv_norm_forward.1} parent=11 // pred_fallthru
        _
      // Predicated region
      $region17: #{conv_norm_forward.1} parent=11 // pred_check
        %p170 = pneg %p124
      $region18: #{conv_norm_forward.1} parent=11 // pred_check_branch
        %172 = sbr.rel (%p170) target = $region20
      $region19: #{conv_norm_forward.1} parent=11 // pred_region
        _
      $region20: #{conv_norm_forward.1} parent=11 // pred_fallthru
        _
    $region12: #{conv_norm_forward.1} parent=5 // pred_fallthru
      _
    %p173 = scmp.lt.s32.totalorder %s10, 2
    // Predicated region
    $region21: #{conv_norm_forward.1} parent=5 // pred_check
      %p174 = pneg %p173
    $region22: #{conv_norm_forward.1} parent=5 // pred_check_branch
      %176 = sbr.rel (%p174) target = $region24
    $region23: #{conv_norm_forward.1} parent=5 // pred_region
      // Predicated region
      $region25: #{conv_norm_forward.1} parent=23 // pred_check
        %p177 = pneg %p44
      $region26: #{conv_norm_forward.1} parent=23 // pred_check_branch
        %179 = sbr.rel (%p177) target = $region28
      $region27: #{conv_norm_forward.1} parent=23 // pred_region
        %s180 = smul.u32 5, %s18
        %s181 = ssub.s32 6, %s180
        %p182 = scmp.lt.s32.totalorder %s181, 5
        %s183 = scalar_select %p182, %s181, 5
        %s184 = smul.u32 32, %s183
        %p185 = scmp.lt.s32.totalorder %s17, 1
        %s186 = scalar_select %p185, %s17, 1
        %p187 = scmp.lt.s32.totalorder %s180, 5
        %s188 = scalar_select %p187, %s180, 5
        %s189 = smul.addr %s186, 6
        %s190 = sadd.s32 %s188, %s189
        %s191 = smul.addr %s190, 2
        %s192 = scalar_lea.vmem %s0, %s191
        %s193 = smul.u32 5, %s18
        %s194 = ssub.s32 6, %s193
        %p195 = scmp.lt.s32.totalorder %s194, 5
        %s196 = scalar_select %p195, %s194, 5
        %s197 = smul.u32 32, %s196
      $region28: #{conv_norm_forward.1} parent=23 // pred_fallthru
        _
      // Predicated region
      $region29: #{conv_norm_forward.1} parent=23 // pred_check
        %p198 = pneg %p76
      $region30: #{conv_norm_forward.1} parent=23 // pred_check_branch
        %200 = sbr.rel (%p198) target = $region32
      $region31: #{conv_norm_forward.1} parent=23 // pred_region
        %s201 = sadd.s32 %s18, 1
        %s202 = smul.u32 %s201, 5
        %p203 = scmp.lt.s32.totalorder %s17, 1
        %s204 = scalar_select %p203, %s17, 1
        %p205 = scmp.lt.s32.totalorder %s202, 5
        %s206 = scalar_select %p205, %s202, 5
        %s207 = smul.addr %s204, 6
        %s208 = sadd.s32 %s206, %s207
        %s209 = smul.addr %s208, 2
        %s210 = scalar_lea.vmem %s1, %s209
        %s211 = sadd.s32 %s18, 1
        %s212 = smul.u32 %s211, 5
      $region32: #{conv_norm_forward.1} parent=23 // pred_fallthru
        _
    $region24: #{conv_norm_forward.1} parent=5 // pred_fallthru
      _
    %p213 = scmp.le.s32.totalorder 1, %s10
    %p214 = scmp.lt.s32.totalorder %s10, 3
    %p215 = pnand %p213, %p214
    %p216 = pneg %p215
    // Predicated region
    $region33: #{conv_norm_forward.1} parent=5 // pred_check
      _
    $region34: #{conv_norm_forward.1} parent=5 // pred_check_branch
      %218 = sbr.rel (%p215) target = $region36
    $region35: #{conv_norm_forward.1} parent=5 // pred_region
      %s219 = ssub.s32 %s10, 1
      %s220 = smul.u32 5, %s20
      %s221 = ssub.s32 6, %s220
      %p222 = scmp.lt.s32.totalorder %s221, 5
      %s223 = scalar_select %p222, %s221, 5
      %s224 = smul.u32 32, %s223
      %p225 = scmp.lt.s32.totalorder %s19, 1
      %s226 = scalar_select %p225, %s19, 1
      %p227 = scmp.lt.s32.totalorder %s220, 5
      %s228 = scalar_select %p227, %s220, 5
      %s229 = smul.addr %s226, 6
      %s230 = sadd.s32 %s228, %s229
      %s231 = smul.addr %s230, 2
      %s232 = scalar_lea.vmem %s0, %s231
      %p233 = pneg %p50
      %p234 = pneg %p47
      %s235 = sadd.s32 %s20, 1
      %s236 = smul.u32 %s235, 5
      %p237 = scmp.lt.s32.totalorder %s19, 1
      %s238 = scalar_select %p237, %s19, 1
      %p239 = scmp.lt.s32.totalorder %s236, 5
      %s240 = scalar_select %p239, %s236, 5
      %s241 = smul.addr %s238, 6
      %s242 = sadd.s32 %s240, %s241
      %s243 = smul.addr %s242, 2
      %s244 = scalar_lea.vmem %s1, %s243
      %p245 = pneg %p82
      %p246 = pneg %p79
      %p247 = pneg %p103
      %p248 = pneg %p100
      %p249 = pneg %p124
      %p250 = pneg %p121
      %p251 = pneg %p152
      %p252 = pneg %p149
      %s253 = smul.u32 5, %s20
      %p254 = scmp.lt.s32.totalorder %s19, 1
      %s255 = scalar_select %p254, %s19, 1
      %p256 = scmp.lt.s32.totalorder %s253, 4
      %s257 = scalar_select %p256, %s253, 4
      %s258 = smul.addr %s255, 5
      %s259 = sadd.s32 %s257, %s258
      %s260 = smul.addr %s259, 8
      %s261 = scalar_lea.vmem %s4, %s260
      %s262 = smul.u32 5, %s20
      %s263 = ssub.s32 6, %s262
      %p264 = scmp.lt.s32.totalorder %s263, 5
      %s265 = scalar_select %p264, %s263, 5
      %s266 = smul.u32 32, %s265
      %p267 = scmp.lt.s32.totalorder %s19, 1
      %s268 = scalar_select %p267, %s19, 1
      %p269 = scmp.lt.s32.totalorder %s262, 5
      %s270 = scalar_select %p269, %s262, 5
      %s271 = smul.addr %s268, 6
      %s272 = sadd.s32 %s270, %s271
      %s273 = smul.addr %s272, 2
      %s274 = scalar_lea.vmem %s0, %s273
      %s275 = smul.u32 5, %s20
      %s276 = ssub.s32 6, %s275
      %p277 = scmp.lt.s32.totalorder %s276, 5
      %s278 = scalar_select %p277, %s276, 5
      %s279 = smul.u32 32, %s278
      %s280 = sadd.s32 %s20, 1
      %s281 = smul.u32 %s280, 5
      %p282 = scmp.lt.s32.totalorder %s19, 1
      %s283 = scalar_select %p282, %s19, 1
      %p284 = scmp.lt.s32.totalorder %s281, 5
      %s285 = scalar_select %p284, %s281, 5
      %s286 = smul.addr %s283, 6
      %s287 = sadd.s32 %s285, %s286
      %s288 = smul.addr %s287, 2
      %s289 = scalar_lea.vmem %s1, %s288
      %s290 = sadd.s32 %s20, 1
      %s291 = smul.u32 %s290, 5
      %s292 = smul.u32 5, %s20
      %p293 = scmp.lt.s32.totalorder %s19, 1
      %s294 = scalar_select %p293, %s19, 1
      %p295 = scmp.lt.s32.totalorder %s292, 4
      %s296 = scalar_select %p295, %s292, 4
      %s297 = smul.addr %s294, 5
      %s298 = sadd.s32 %s296, %s297
      %s299 = smul.addr %s298, 8
      %s300 = scalar_lea.vmem %s4, %s299
      %s301 = smul.u32 5, %s20
      %v303 = vld [vmem:[%s274] sm:$0xff]
      %v304 = vld [vmem:[%s274 + $0x8] sm:$0x3]
      %v305 = vld [vmem:[%s289] sm:$0x3]
      %v308 = vcombine.high %v303, %v303
      %v310 = vunpack.c.l.s4 1983009808
      %v311 = vunpack.c.0.s8 %v310
      %v312 = vlaneseq
      %v313 = vshrl.u32 %v312, 7
      %v314 = vsub.s32 %v311, %v313
      %v315 = vrot.slane %v303, %v314
      %v317 = vunpack.c.l.s4 1983009808
      %v318 = vunpack.c.0.s8 %v317
      %v319 = vlaneseq
      %v320 = vshrl.u32 %v319, 7
      %v321 = vsub.s32 %v318, %v320
      %v322 = vrot.slane %v308, %v321
      %v323 = vcombine.high %v315, %v315
      %v324 = vcombine.high %v322, %v322
      %v326 = vunpack.c.l.s4 1983009808
      %v327 = vunpack.c.0.s8 %v326
      %v328 = vlaneseq
      %v329 = vshrl.u32 %v328, 7
      %v330 = vsub.s32 %v327, %v329
      %v331 = vrot.slane %v304, %v330
      %v332 = vld [vmem:[%s2] sm:$0xf]
      %s333 = scalar_lea.vmem %s2, 4
      %v334 = vld [vmem:[%s333] sm:$0xf]
      %336 = vrot.lane.b32.xlu0 %v315, 127
      %v337 = vpop.permute.xlu0 %336
      %338 = vrot.lane.b32.xlu0 %v323, 127
      %v339 = vpop.permute.xlu0 %338
      %340 = vrot.lane.b32.xlu0 %v322, 127
      %v341 = vpop.permute.xlu0 %340
      %342 = vrot.lane.b32.xlu0 %v324, 127
      %v343 = vpop.permute.xlu0 %342
      %344 = vrot.lane.b32.xlu0 %v331, 127
      %v345 = vpop.permute.xlu0 %344
      %346 = vrot.lane.b32.xlu0 %v305, 127
      %v347 = vpop.permute.xlu0 %346
      %vm348 = vcmask 1039360
      %v349 = vsel %vm348, %v337, %v339
      %v350 = vsel %vm348, %v339, %v341
      %v351 = vsel %vm348, %v341, %v343
      %v352 = vsel %vm348, %v343, %v345
      %v353 = vsel %vm348, %v345, %v347
      %vm354 = vcmask 23552
      %v356 = vsel %vm354, %v334, 0
      %vm358 = vcmask 1040384
      %vm359 = vcmask 1041408
      %v360 = vsel %vm358, 4294967295, 65535
      %v361 = vsel %vm359, %v360, 0
      %v363 = vand.u32 %v349, %v361
      %v366 = vand.u32 %v350, %v361
      %v369 = vand.u32 %v351, %v361
      %v372 = vand.u32 %v352, %v361
      %v375 = vand.u32 %v353, %v361
      %377 = vmatprep.subr.bf16.mxu0 %v366
      %378 = vmatpush1.bf16.msra.mxu0 %v363
      %379 = vmatprep.subr.bf16.mxu0 0
      %380 = vmatpush1.bf16.msra.mxu0 0
      %381 = vmatprep.subr.bf16.mxu0 0
      %382 = vmatpush1.bf16.msra.mxu0 0
      %383 = vmatprep.subr.bf16.mxu0 0
      %384 = vmatpush1.bf16.msra.mxu0 0
      %385 = vmatprep.subr.bf16.mxu0 0
      %386 = vmatpush1.bf16.msra.mxu0 0
      %387 = vmatprep.subr.bf16.mxu0 0
      %388 = vmatpush1.bf16.msra.mxu0 0
      %389 = vmatprep.subr.bf16.mxu0 0
      %390 = vmatpush1.bf16.msra.mxu0 0
      %391 = vmatprep.subr.bf16.mxu0 0
      %392 = vmatpush1.bf16.msra.mxu0 0
      %393 = vmatprep.subr.bf16.mxu0 0
      %394 = vmatpush1.bf16.msra.mxu0 0
      %395 = vmatprep.subr.bf16.mxu0 0
      %396 = vmatpush1.bf16.msra.mxu0 0
      %397 = vmatprep.subr.bf16.mxu0 0
      %398 = vmatpush1.bf16.msra.mxu0 0
      %399 = vmatprep.subr.bf16.mxu0 0
      %400 = vmatpush1.bf16.msra.mxu0 0
      %401 = vmatprep.subr.bf16.mxu0 0
      %402 = vmatpush1.bf16.msra.mxu0 0
      %403 = vmatprep.subr.bf16.mxu0 0
      %404 = vmatpush1.bf16.msra.mxu0 0
      %405 = vmatprep.subr.bf16.mxu0 0
      %406 = vmatpush1.bf16.msra.mxu0 0
      %407 = vmatprep.subr.bf16.mxu0 0
      %408 = vmatpush1.bf16.msra.mxu0 0
      %409 = vmatprep.mubr.bf16.mxu0 0
      %410 = vmatmul.mubr.bf16.gmra.mrb[0].mxu0 %v356
      %v411 = vpop.f32.mrb[0].mxu0
      %v412 = vadd.f32 0.0, %v411
      %v413 = vpop.f32.mrb[0].mxu0
      %v414 = vadd.f32 0.0, %v413
      %v415 = vpop.f32.mrb[0].mxu0
      %v416 = vpop.f32.mrb[0].mxu0
      %417 = vdwg.mxu0
      %418 = vmatprep.subr.bf16.mxu0 %v372
      %419 = vmatpush1.bf16.msra.mxu0 %v369
      %420 = vmatprep.subr.bf16.mxu0 0
      %421 = vmatpush1.bf16.msra.mxu0 0
      %422 = vmatprep.subr.bf16.mxu0 0
      %423 = vmatpush1.bf16.msra.mxu0 0
      %424 = vmatprep.subr.bf16.mxu0 0
      %425 = vmatpush1.bf16.msra.mxu0 0
      %426 = vmatprep.subr.bf16.mxu0 0
      %427 = vmatpush1.bf16.msra.mxu0 0
      %428 = vmatprep.subr.bf16.mxu0 0
      %429 = vmatpush1.bf16.msra.mxu0 0
      %430 = vmatprep.subr.bf16.mxu0 0
      %431 = vmatpush1.bf16.msra.mxu0 0
      %432 = vmatprep.subr.bf16.mxu0 0
      %433 = vmatpush1.bf16.msra.mxu0 0
      %434 = vmatprep.subr.bf16.mxu0 0
      %435 = vmatpush1.bf16.msra.mxu0 0
      %436 = vmatprep.subr.bf16.mxu0 0
      %437 = vmatpush1.bf16.msra.mxu0 0
      %438 = vmatprep.subr.bf16.mxu0 0
      %439 = vmatpush1.bf16.msra.mxu0 0
      %440 = vmatprep.subr.bf16.mxu0 0
      %441 = vmatpush1.bf16.msra.mxu0 0
      %442 = vmatprep.subr.bf16.mxu0 0
      %443 = vmatpush1.bf16.msra.mxu0 0
      %444 = vmatprep.subr.bf16.mxu0 0
      %445 = vmatpush1.bf16.msra.mxu0 0
      %446 = vmatprep.subr.bf16.mxu0 0
      %447 = vmatpush1.bf16.msra.mxu0 0
      %448 = vmatprep.subr.bf16.mxu0 0
      %449 = vmatpush1.bf16.msra.mxu0 0
      %450 = vmatprep.mubr.bf16.mxu0 0
      %451 = vmatmul.mubr.bf16.gmra.mrb[0].mxu0 %v356
      %v452 = vpop.f32.mrb[0].mxu0
      %v453 = vadd.f32 0.0, %v452
      %v454 = vpop.f32.mrb[0].mxu0
      %v455 = vadd.f32 0.0, %v454
      %v456 = vpop.f32.mrb[0].mxu0
      %v457 = vpop.f32.mrb[0].mxu0
      %458 = vdwg.mxu0
      %459 = vmatprep.subr.bf16.mxu0 0
      %460 = vmatpush1.bf16.msra.mxu0 %v375
      %461 = vmatprep.subr.bf16.mxu0 0
      %462 = vmatpush1.bf16.msra.mxu0 0
      %463 = vmatprep.subr.bf16.mxu0 0
      %464 = vmatpush1.bf16.msra.mxu0 0
      %465 = vmatprep.subr.bf16.mxu0 0
      %466 = vmatpush1.bf16.msra.mxu0 0
      %467 = vmatprep.subr.bf16.mxu0 0
      %468 = vmatpush1.bf16.msra.mxu0 0
      %469 = vmatprep.subr.bf16.mxu0 0
      %470 = vmatpush1.bf16.msra.mxu0 0
      %471 = vmatprep.subr.bf16.mxu0 0
      %472 = vmatpush1.bf16.msra.mxu0 0
      %473 = vmatprep.subr.bf16.mxu0 0
      %474 = vmatpush1.bf16.msra.mxu0 0
      %475 = vmatprep.subr.bf16.mxu0 0
      %476 = vmatpush1.bf16.msra.mxu0 0
      %477 = vmatprep.subr.bf16.mxu0 0
      %478 = vmatpush1.bf16.msra.mxu0 0
      %479 = vmatprep.subr.bf16.mxu0 0
      %480 = vmatpush1.bf16.msra.mxu0 0
      %481 = vmatprep.subr.bf16.mxu0 0
      %482 = vmatpush1.bf16.msra.mxu0 0
      %483 = vmatprep.subr.bf16.mxu0 0
      %484 = vmatpush1.bf16.msra.mxu0 0
      %485 = vmatprep.subr.bf16.mxu0 0
      %486 = vmatpush1.bf16.msra.mxu0 0
      %487 = vmatprep.subr.bf16.mxu0 0
      %488 = vmatpush1.bf16.msra.mxu0 0
      %489 = vmatprep.subr.bf16.mxu0 0
      %490 = vmatpush1.bf16.msra.mxu0 0
      %491 = vmatprep.mubr.bf16.mxu0 0
      %492 = vmatmul.mubr.bf16.gmra.mrb[0].mxu0 %v356
      %v493 = vpop.f32.mrb[0].mxu0
      %v494 = vadd.f32 0.0, %v493
      %v495 = vpop.f32.mrb[0].mxu0
      %v496 = vpop.f32.mrb[0].mxu0
      %v497 = vpop.f32.mrb[0].mxu0
      %498 = vdwg.mxu0
      %v500 = vsel %vm354, %v332, 0
      %v503 = vand.u32 %v315, %v361
      %v506 = vand.u32 %v323, %v361
      %v509 = vand.u32 %v322, %v361
      %v512 = vand.u32 %v324, %v361
      %v515 = vand.u32 %v331, %v361
      %517 = vmatprep.subr.bf16.mxu0 %v506
      %518 = vmatpush1.bf16.msra.mxu0 %v503
      %519 = vmatprep.subr.bf16.mxu0 0
      %520 = vmatpush1.bf16.msra.mxu0 0
      %521 = vmatprep.subr.bf16.mxu0 0
      %522 = vmatpush1.bf16.msra.mxu0 0
      %523 = vmatprep.subr.bf16.mxu0 0
      %524 = vmatpush1.bf16.msra.mxu0 0
      %525 = vmatprep.subr.bf16.mxu0 0
      %526 = vmatpush1.bf16.msra.mxu0 0
      %527 = vmatprep.subr.bf16.mxu0 0
      %528 = vmatpush1.bf16.msra.mxu0 0
      %529 = vmatprep.subr.bf16.mxu0 0
      %530 = vmatpush1.bf16.msra.mxu0 0
      %531 = vmatprep.subr.bf16.mxu0 0
      %532 = vmatpush1.bf16.msra.mxu0 0
      %533 = vmatprep.subr.bf16.mxu0 0
      %534 = vmatpush1.bf16.msra.mxu0 0
      %535 = vmatprep.subr.bf16.mxu0 0
      %536 = vmatpush1.bf16.msra.mxu0 0
      %537 = vmatprep.subr.bf16.mxu0 0
      %538 = vmatpush1.bf16.msra.mxu0 0
      %539 = vmatprep.subr.bf16.mxu0 0
      %540 = vmatpush1.bf16.msra.mxu0 0
      %541 = vmatprep.subr.bf16.mxu0 0
      %542 = vmatpush1.bf16.msra.mxu0 0
      %543 = vmatprep.subr.bf16.mxu0 0
      %544 = vmatpush1.bf16.msra.mxu0 0
      %545 = vmatprep.subr.bf16.mxu0 0
      %546 = vmatpush1.bf16.msra.mxu0 0
      %547 = vmatprep.subr.bf16.mxu0 0
      %548 = vmatpush1.bf16.msra.mxu0 0
      %549 = vmatprep.mubr.bf16.mxu0 0
      %550 = vmatmul.mubr.bf16.gmra.mrb[0].mxu0 %v500
      %v551 = vpop.f32.mrb[0].mxu0
      %v552 = vadd.f32 %v412, %v551
      %v553 = vpop.f32.mrb[0].mxu0
      %v554 = vadd.f32 %v414, %v553
      %v555 = vpop.f32.mrb[0].mxu0
      %v556 = vpop.f32.mrb[0].mxu0
      %557 = vdwg.mxu0
      %558 = vmatprep.subr.bf16.mxu0 %v512
      %559 = vmatpush1.bf16.msra.mxu0 %v509
      %560 = vmatprep.subr.bf16.mxu0 0
      %561 = vmatpush1.bf16.msra.mxu0 0
      %562 = vmatprep.subr.bf16.mxu0 0
      %563 = vmatpush1.bf16.msra.mxu0 0
      %564 = vmatprep.subr.bf16.mxu0 0
      %565 = vmatpush1.bf16.msra.mxu0 0
      %566 = vmatprep.subr.bf16.mxu0 0
      %567 = vmatpush1.bf16.msra.mxu0 0
      %568 = vmatprep.subr.bf16.mxu0 0
      %569 = vmatpush1.bf16.msra.mxu0 0
      %570 = vmatprep.subr.bf16.mxu0 0
      %571 = vmatpush1.bf16.msra.mxu0 0
      %572 = vmatprep.subr.bf16.mxu0 0
      %573 = vmatpush1.bf16.msra.mxu0 0
      %574 = vmatprep.subr.bf16.mxu0 0
      %575 = vmatpush1.bf16.msra.mxu0 0
      %576 = vmatprep.subr.bf16.mxu0 0
      %577 = vmatpush1.bf16.msra.mxu0 0
      %578 = vmatprep.subr.bf16.mxu0 0
      %579 = vmatpush1.bf16.msra.mxu0 0
      %580 = vmatprep.subr.bf16.mxu0 0
      %581 = vmatpush1.bf16.msra.mxu0 0
      %582 = vmatprep.subr.bf16.mxu0 0
      %583 = vmatpush1.bf16.msra.mxu0 0
      %584 = vmatprep.subr.bf16.mxu0 0
      %585 = vmatpush1.bf16.msra.mxu0 0
      %586 = vmatprep.subr.bf16.mxu0 0
      %587 = vmatpush1.bf16.msra.mxu0 0
      %588 = vmatprep.subr.bf16.mxu0 0
      %589 = vmatpush1.bf16.msra.mxu0 0
      %590 = vmatprep.mubr.bf16.mxu0 0
      %591 = vmatmul.mubr.bf16.gmra.mrb[0].mxu0 %v500
      %v592 = vpop.f32.mrb[0].mxu0
      %v593 = vadd.f32 %v453, %v592
      %v594 = vpop.f32.mrb[0].mxu0
      %v595 = vadd.f32 %v455, %v594
      %v596 = vpop.f32.mrb[0].mxu0
      %v597 = vpop.f32.mrb[0].mxu0
      %598 = vdwg.mxu0
      %599 = vmatprep.subr.bf16.mxu0 0
      %600 = vmatpush1.bf16.msra.mxu0 %v515
      %601 = vmatprep.subr.bf16.mxu0 0
      %602 = vmatpush1.bf16.msra.mxu0 0
      %603 = vmatprep.subr.bf16.mxu0 0
      %604 = vmatpush1.bf16.msra.mxu0 0
      %605 = vmatprep.subr.bf16.mxu0 0
      %606 = vmatpush1.bf16.msra.mxu0 0
      %607 = vmatprep.subr.bf16.mxu0 0
      %608 = vmatpush1.bf16.msra.mxu0 0
      %609 = vmatprep.subr.bf16.mxu0 0
      %610 = vmatpush1.bf16.msra.mxu0 0
      %611 = vmatprep.subr.bf16.mxu0 0
      %612 = vmatpush1.bf16.msra.mxu0 0
      %613 = vmatprep.subr.bf16.mxu0 0
      %614 = vmatpush1.bf16.msra.mxu0 0
      %615 = vmatprep.subr.bf16.mxu0 0
      %616 = vmatpush1.bf16.msra.mxu0 0
      %617 = vmatprep.subr.bf16.mxu0 0
      %618 = vmatpush1.bf16.msra.mxu0 0
      %619 = vmatprep.subr.bf16.mxu0 0
      %620 = vmatpush1.bf16.msra.mxu0 0
      %621 = vmatprep.subr.bf16.mxu0 0
      %622 = vmatpush1.bf16.msra.mxu0 0
      %623 = vmatprep.subr.bf16.mxu0 0
      %624 = vmatpush1.bf16.msra.mxu0 0
      %625 = vmatprep.subr.bf16.mxu0 0
      %626 = vmatpush1.bf16.msra.mxu0 0
      %627 = vmatprep.subr.bf16.mxu0 0
      %628 = vmatpush1.bf16.msra.mxu0 0
      %629 = vmatprep.subr.bf16.mxu0 0
      %630 = vmatpush1.bf16.msra.mxu0 0
      %631 = vmatprep.mubr.bf16.mxu0 0
      %632 = vmatmul.mubr.bf16.gmra.mrb[0].mxu0 %v500
      %v633 = vpop.f32.mrb[0].mxu0
      %v634 = vadd.f32 %v494, %v633
      %v635 = vpop.f32.mrb[0].mxu0
      %v636 = vpop.f32.mrb[0].mxu0
      %v637 = vpop.f32.mrb[0].mxu0
      %638 = vdwg.mxu0
      %s639 = scalar_lea.vmem %s2, 8
      %v640 = vld [vmem:[%s639] sm:$0xf]
      %641 = vrot.lane.b32.xlu0 %v315, 126
      %v642 = vpop.permute.xlu0 %641
      %643 = vrot.lane.b32.xlu0 %v323, 126
      %v644 = vpop.permute.xlu0 %643
      %645 = vrot.lane.b32.xlu0 %v322, 126
      %v646 = vpop.permute.xlu0 %645
      %647 = vrot.lane.b32.xlu0 %v324, 126
      %v648 = vpop.permute.xlu0 %647
      %649 = vrot.lane.b32.xlu0 %v331, 126
      %v650 = vpop.permute.xlu0 %649
      %651 = vrot.lane.b32.xlu0 %v305, 126
      %v652 = vpop.permute.xlu0 %651
      %vm653 = vcmask 1031168
      %v654 = vsel %vm653, %v642, %v644
      %v655 = vsel %vm653, %v644, %v646
      %v656 = vsel %vm653, %v646, %v648
      %v657 = vsel %vm653, %v648, %v650
      %v658 = vsel %vm653, %v650, %v652
      %v660 = vsel %vm354, %v640, 0
      %v663 = vand.u32 %v654, %v361
      %v666 = vand.u32 %v655, %v361
      %v669 = vand.u32 %v656, %v361
      %v672 = vand.u32 %v657, %v361
      %v675 = vand.u32 %v658, %v361
      %677 = vmatprep.subr.bf16.mxu0 %v666
      %678 = vmatpush1.bf16.msra.mxu0 %v663
      %679 = vmatprep.subr.bf16.mxu0 0
      %680 = vmatpush1.bf16.msra.mxu0 0
      %681 = vmatprep.subr.bf16.mxu0 0
      %682 = vmatpush1.bf16.msra.mxu0 0
      %683 = vmatprep.subr.bf16.mxu0 0
      %684 = vmatpush1.bf16.msra.mxu0 0
      %685 = vmatprep.subr.bf16.mxu0 0
      %686 = vmatpush1.bf16.msra.mxu0 0
      %687 = vmatprep.subr.bf16.mxu0 0
      %688 = vmatpush1.bf16.msra.mxu0 0
      %689 = vmatprep.subr.bf16.mxu0 0
      %690 = vmatpush1.bf16.msra.mxu0 0
      %691 = vmatprep.subr.bf16.mxu0 0
      %692 = vmatpush1.bf16.msra.mxu0 0
      %693 = vmatprep.subr.bf16.mxu0 0
      %694 = vmatpush1.bf16.msra.mxu0 0
      %695 = vmatprep.subr.bf16.mxu0 0
      %696 = vmatpush1.bf16.msra.mxu0 0
      %697 = vmatprep.subr.bf16.mxu0 0
      %698 = vmatpush1.bf16.msra.mxu0 0
      %699 = vmatprep.subr.bf16.mxu0 0
      %700 = vmatpush1.bf16.msra.mxu0 0
      %701 = vmatprep.subr.bf16.mxu0 0
      %702 = vmatpush1.bf16.msra.mxu0 0
      %703 = vmatprep.subr.bf16.mxu0 0
      %704 = vmatpush1.bf16.msra.mxu0 0
      %705 = vmatprep.subr.bf16.mxu0 0
      %706 = vmatpush1.bf16.msra.mxu0 0
      %707 = vmatprep.subr.bf16.mxu0 0
      %708 = vmatpush1.bf16.msra.mxu0 0
      %709 = vmatprep.mubr.bf16.mxu0 0
      %710 = vmatmul.mubr.bf16.gmra.mrb[0].mxu0 %v660
      %v711 = vpop.f32.mrb[0].mxu0
      %v712 = vadd.f32 0.0, %v711
      %v713 = vpop.f32.mrb[0].mxu0
      %v714 = vadd.f32 0.0, %v713
      %v715 = vpop.f32.mrb[0].mxu0
      %v716 = vpop.f32.mrb[0].mxu0
      %717 = vdwg.mxu0
      %718 = vmatprep.subr.bf16.mxu0 %v672
      %719 = vmatpush1.bf16.msra.mxu0 %v669
      %720 = vmatprep.subr.bf16.mxu0 0
      %721 = vmatpush1.bf16.msra.mxu0 0
      %722 = vmatprep.subr.bf16.mxu0 0
      %723 = vmatpush1.bf16.msra.mxu0 0
      %724 = vmatprep.subr.bf16.mxu0 0
      %725 = vmatpush1.bf16.msra.mxu0 0
      %726 = vmatprep.subr.bf16.mxu0 0
      %727 = vmatpush1.bf16.msra.mxu0 0
      %728 = vmatprep.subr.bf16.mxu0 0
      %729 = vmatpush1.bf16.msra.mxu0 0
      %730 = vmatprep.subr.bf16.mxu0 0
      %731 = vmatpush1.bf16.msra.mxu0 0
      %732 = vmatprep.subr.bf16.mxu0 0
      %733 = vmatpush1.bf16.msra.mxu0 0
      %734 = vmatprep.subr.bf16.mxu0 0
      %735 = vmatpush1.bf16.msra.mxu0 0
      %736 = vmatprep.subr.bf16.mxu0 0
      %737 = vmatpush1.bf16.msra.mxu0 0
      %738 = vmatprep.subr.bf16.mxu0 0
      %739 = vmatpush1.bf16.msra.mxu0 0
      %740 = vmatprep.subr.bf16.mxu0 0
      %741 = vmatpush1.bf16.msra.mxu0 0
      %742 = vmatprep.subr.bf16.mxu0 0
      %743 = vmatpush1.bf16.msra.mxu0 0
      %744 = vmatprep.subr.bf16.mxu0 0
      %745 = vmatpush1.bf16.msra.mxu0 0
      %746 = vmatprep.subr.bf16.mxu0 0
      %747 = vmatpush1.bf16.msra.mxu0 0
      %748 = vmatprep.subr.bf16.mxu0 0
      %749 = vmatpush1.bf16.msra.mxu0 0
      %750 = vmatprep.mubr.bf16.mxu0 0
      %751 = vmatmul.mubr.bf16.gmra.mrb[0].mxu0 %v660
      %v752 = vpop.f32.mrb[0].mxu0
      %v753 = vadd.f32 0.0, %v752
      %v754 = vpop.f32.mrb[0].mxu0
      %v755 = vadd.f32 0.0, %v754
      %v756 = vpop.f32.mrb[0].mxu0
      %v757 = vpop.f32.mrb[0].mxu0
      %758 = vdwg.mxu0
      %759 = vmatprep.subr.bf16.mxu0 0
      %760 = vmatpush1.bf16.msra.mxu0 %v675
      %761 = vmatprep.subr.bf16.mxu0 0
      %762 = vmatpush1.bf16.msra.mxu0 0
      %763 = vmatprep.subr.bf16.mxu0 0
      %764 = vmatpush1.bf16.msra.mxu0 0
      %765 = vmatprep.subr.bf16.mxu0 0
      %766 = vmatpush1.bf16.msra.mxu0 0
      %767 = vmatprep.subr.bf16.mxu0 0
      %768 = vmatpush1.bf16.msra.mxu0 0
      %769 = vmatprep.subr.bf16.mxu0 0
      %770 = vmatpush1.bf16.msra.mxu0 0
      %771 = vmatprep.subr.bf16.mxu0 0
      %772 = vmatpush1.bf16.msra.mxu0 0
      %773 = vmatprep.subr.bf16.mxu0 0
      %774 = vmatpush1.bf16.msra.mxu0 0
      %775 = vmatprep.subr.bf16.mxu0 0
      %776 = vmatpush1.bf16.msra.mxu0 0
      %777 = vmatprep.subr.bf16.mxu0 0
      %778 = vmatpush1.bf16.msra.mxu0 0
      %779 = vmatprep.subr.bf16.mxu0 0
      %780 = vmatpush1.bf16.msra.mxu0 0
      %781 = vmatprep.subr.bf16.mxu0 0
      %782 = vmatpush1.bf16.msra.mxu0 0
      %783 = vmatprep.subr.bf16.mxu0 0
      %784 = vmatpush1.bf16.msra.mxu0 0
      %785 = vmatprep.subr.bf16.mxu0 0
      %786 = vmatpush1.bf16.msra.mxu0 0
      %787 = vmatprep.subr.bf16.mxu0 0
      %788 = vmatpush1.bf16.msra.mxu0 0
      %789 = vmatprep.subr.bf16.mxu0 0
      %790 = vmatpush1.bf16.msra.mxu0 0
      %791 = vmatprep.mubr.bf16.mxu0 0
      %792 = vmatmul.mubr.bf16.gmra.mrb[0].mxu0 %v660
      %v793 = vpop.f32.mrb[0].mxu0
      %v794 = vadd.f32 0.0, %v793
      %v795 = vpop.f32.mrb[0].mxu0
      %v796 = vpop.f32.mrb[0].mxu0
      %v797 = vpop.f32.mrb[0].mxu0
      %798 = vdwg.mxu0
      %v799 = vadd.f32 %v552, %v712
      %v800 = vadd.f32 %v554, %v714
      %v801 = vadd.f32 %v593, %v753
      %v802 = vadd.f32 %v595, %v755
      %v803 = vadd.f32 %v634, %v794
      %s804 = scalar_lea.vmem %s2, 12
      %v805 = vld [vmem:[%s804] sm:$0xf]
      %806 = vrot.lane.b32.xlu0 %v315, 94
      %v807 = vpop.permute.xlu0 %806
      %808 = vrot.lane.b32.xlu0 %v323, 94
      %v809 = vpop.permute.xlu0 %808
      %810 = vrot.lane.b32.xlu0 %v322, 94
      %v811 = vpop.permute.xlu0 %810
      %812 = vrot.lane.b32.xlu0 %v324, 94
      %v813 = vpop.permute.xlu0 %812
      %814 = vrot.lane.b32.xlu0 %v331, 94
      %v815 = vpop.permute.xlu0 %814
      %816 = vrot.lane.b32.xlu0 %v305, 94
      %v817 = vpop.permute.xlu0 %816
      %vm818 = vcmask 769024
      %v819 = vsel %vm818, %v807, %v809
      %v820 = vsel %vm818, %v809, %v811
      %v821 = vsel %vm818, %v811, %v813
      %v822 = vsel %vm818, %v813, %v815
      %v823 = vsel %vm818, %v815, %v817
      %v825 = vsel %vm354, %v805, 0
      %v828 = vand.u32 %v819, %v361
      %v831 = vand.u32 %v820, %v361
      %v834 = vand.u32 %v821, %v361
      %v837 = vand.u32 %v822, %v361
      %v840 = vand.u32 %v823, %v361
      %842 = vmatprep.subr.bf16.mxu0 %v831
      %843 = vmatpush1.bf16.msra.mxu0 %v828
      %844 = vmatprep.subr.bf16.mxu0 0
      %845 = vmatpush1.bf16.msra.mxu0 0
      %846 = vmatprep.subr.bf16.mxu0 0
      %847 = vmatpush1.bf16.msra.mxu0 0
      %848 = vmatprep.subr.bf16.mxu0 0
      %849 = vmatpush1.bf16.msra.mxu0 0
      %850 = vmatprep.subr.bf16.mxu0 0
      %851 = vmatpush1.bf16.msra.mxu0 0
      %852 = vmatprep.subr.bf16.mxu0 0
      %853 = vmatpush1.bf16.msra.mxu0 0
      %854 = vmatprep.subr.bf16.mxu0 0
      %855 = vmatpush1.bf16.msra.mxu0 0
      %856 = vmatprep.subr.bf16.mxu0 0
      %857 = vmatpush1.bf16.msra.mxu0 0
      %858 = vmatprep.subr.bf16.mxu0 0
      %859 = vmatpush1.bf16.msra.mxu0 0
      %860 = vmatprep.subr.bf16.mxu0 0
      %861 = vmatpush1.bf16.msra.mxu0 0
      %862 = vmatprep.subr.bf16.mxu0 0
      %863 = vmatpush1.bf16.msra.mxu0 0
      %864 = vmatprep.subr.bf16.mxu0 0
      %865 = vmatpush1.bf16.msra.mxu0 0
      %866 = vmatprep.subr.bf16.mxu0 0
      %867 = vmatpush1.bf16.msra.mxu0 0
      %868 = vmatprep.subr.bf16.mxu0 0
      %869 = vmatpush1.bf16.msra.mxu0 0
      %870 = vmatprep.subr.bf16.mxu0 0
      %871 = vmatpush1.bf16.msra.mxu0 0
      %872 = vmatprep.subr.bf16.mxu0 0
      %873 = vmatpush1.bf16.msra.mxu0 0
      %874 = vmatprep.mubr.bf16.mxu0 0
      %875 = vmatmul.mubr.bf16.gmra.mrb[0].mxu0 %v825
      %v876 = vpop.f32.mrb[0].mxu0
      %v877 = vadd.f32 0.0, %v876
      %v878 = vpop.f32.mrb[0].mxu0
      %v879 = vadd.f32 0.0, %v878
      %v880 = vpop.f32.mrb[0].mxu0
      %v881 = vpop.f32.mrb[0].mxu0
      %882 = vdwg.mxu0
      %883 = vmatprep.subr.bf16.mxu0 %v837
      %884 = vmatpush1.bf16.msra.mxu0 %v834
      %885 = vmatprep.subr.bf16.mxu0 0
      %886 = vmatpush1.bf16.msra.mxu0 0
      %887 = vmatprep.subr.bf16.mxu0 0
      %888 = vmatpush1.bf16.msra.mxu0 0
      %889 = vmatprep.subr.bf16.mxu0 0
      %890 = vmatpush1.bf16.msra.mxu0 0
      %891 = vmatprep.subr.bf16.mxu0 0
      %892 = vmatpush1.bf16.msra.mxu0 0
      %893 = vmatprep.subr.bf16.mxu0 0
      %894 = vmatpush1.bf16.msra.mxu0 0
      %895 = vmatprep.subr.bf16.mxu0 0
      %896 = vmatpush1.bf16.msra.mxu0 0
      %897 = vmatprep.subr.bf16.mxu0 0
      %898 = vmatpush1.bf16.msra.mxu0 0
      %899 = vmatprep.subr.bf16.mxu0 0
      %900 = vmatpush1.bf16.msra.mxu0 0
      %901 = vmatprep.subr.bf16.mxu0 0
      %902 = vmatpush1.bf16.msra.mxu0 0
      %903 = vmatprep.subr.bf16.mxu0 0
      %904 = vmatpush1.bf16.msra.mxu0 0
      %905 = vmatprep.subr.bf16.mxu0 0
      %906 = vmatpush1.bf16.msra.mxu0 0
      %907 = vmatprep.subr.bf16.mxu0 0
      %908 = vmatpush1.bf16.msra.mxu0 0
      %909 = vmatprep.subr.bf16.mxu0 0
      %910 = vmatpush1.bf16.msra.mxu0 0
      %911 = vmatprep.subr.bf16.mxu0 0
      %912 = vmatpush1.bf16.msra.mxu0 0
      %913 = vmatprep.subr.bf16.mxu0 0
      %914 = vmatpush1.bf16.msra.mxu0 0
      %915 = vmatprep.mubr.bf16.mxu0 0
      %916 = vmatmul.mubr.bf16.gmra.mrb[0].mxu0 %v825
      %v917 = vpop.f32.mrb[0].mxu0
      %v918 = vadd.f32 0.0, %v917
      %v919 = vpop.f32.mrb[0].mxu0
      %v920 = vadd.f32 0.0, %v919
      %v921 = vpop.f32.mrb[0].mxu0
      %v922 = vpop.f32.mrb[0].mxu0
      %923 = vdwg.mxu0
      %924 = vmatprep.subr.bf16.mxu0 0
      %925 = vmatpush1.bf16.msra.mxu0 %v840
      %926 = vmatprep.subr.bf16.mxu0 0
      %927 = vmatpush1.bf16.msra.mxu0 0
      %928 = vmatprep.subr.bf16.mxu0 0
      %929 = vmatpush1.bf16.msra.mxu0 0
      %930 = vmatprep.subr.bf16.mxu0 0
      %931 = vmatpush1.bf16.msra.mxu0 0
      %932 = vmatprep.subr.bf16.mxu0 0
      %933 = vmatpush1.bf16.msra.mxu0 0
      %934 = vmatprep.subr.bf16.mxu0 0
      %935 = vmatpush1.bf16.msra.mxu0 0
      %936 = vmatprep.subr.bf16.mxu0 0
      %937 = vmatpush1.bf16.msra.mxu0 0
      %938 = vmatprep.subr.bf16.mxu0 0
      %939 = vmatpush1.bf16.msra.mxu0 0
      %940 = vmatprep.subr.bf16.mxu0 0
      %941 = vmatpush1.bf16.msra.mxu0 0
      %942 = vmatprep.subr.bf16.mxu0 0
      %943 = vmatpush1.bf16.msra.mxu0 0
      %944 = vmatprep.subr.bf16.mxu0 0
      %945 = vmatpush1.bf16.msra.mxu0 0
      %946 = vmatprep.subr.bf16.mxu0 0
      %947 = vmatpush1.bf16.msra.mxu0 0
      %948 = vmatprep.subr.bf16.mxu0 0
      %949 = vmatpush1.bf16.msra.mxu0 0
      %950 = vmatprep.subr.bf16.mxu0 0
      %951 = vmatpush1.bf16.msra.mxu0 0
      %952 = vmatprep.subr.bf16.mxu0 0
      %953 = vmatpush1.bf16.msra.mxu0 0
      %954 = vmatprep.subr.bf16.mxu0 0
      %955 = vmatpush1.bf16.msra.mxu0 0
      %956 = vmatprep.mubr.bf16.mxu0 0
      %957 = vmatmul.mubr.bf16.gmra.mrb[0].mxu0 %v825
      %v958 = vpop.f32.mrb[0].mxu0
      %v959 = vadd.f32 0.0, %v958
      %v960 = vpop.f32.mrb[0].mxu0
      %v961 = vpop.f32.mrb[0].mxu0
      %v962 = vpop.f32.mrb[0].mxu0
      %963 = vdwg.mxu0
      %v964 = vadd.f32 %v799, %v877
      %v965 = vadd.f32 %v800, %v879
      %v966 = vadd.f32 %v801, %v918
      %v967 = vadd.f32 %v802, %v920
      %v968 = vadd.f32 %v803, %v959
      %s969 = scalar_lea.vmem %s2, 16
      %v970 = vld [vmem:[%s969] sm:$0xf]
      %971 = vrot.lane.b32.xlu0 %v315, 93
      %v972 = vpop.permute.xlu0 %971
      %973 = vrot.lane.b32.xlu0 %v323, 93
      %v974 = vpop.permute.xlu0 %973
      %975 = vrot.lane.b32.xlu0 %v322, 93
      %v976 = vpop.permute.xlu0 %975
      %977 = vrot.lane.b32.xlu0 %v324, 93
      %v978 = vpop.permute.xlu0 %977
      %979 = vrot.lane.b32.xlu0 %v331, 93
      %v980 = vpop.permute.xlu0 %979
      %981 = vrot.lane.b32.xlu0 %v305, 93
      %v982 = vpop.permute.xlu0 %981
      %vm983 = vcmask 760832
      %v984 = vsel %vm983, %v972, %v974
      %v985 = vsel %vm983, %v974, %v976
      %v986 = vsel %vm983, %v976, %v978
      %v987 = vsel %vm983, %v978, %v980
      %v988 = vsel %vm983, %v980, %v982
      %v990 = vsel %vm354, %v970, 0
      %v993 = vand.u32 %v984, %v361
      %v996 = vand.u32 %v985, %v361
      %v999 = vand.u32 %v986, %v361
      %v1002 = vand.u32 %v987, %v361
      %v1005 = vand.u32 %v988, %v361
      %1007 = vmatprep.subr.bf16.mxu0 %v996
      %1008 = vmatpush1.bf16.msra.mxu0 %v993
      %1009 = vmatprep.subr.bf16.mxu0 0
      %1010 = vmatpush1.bf16.msra.mxu0 0
      %1011 = vmatprep.subr.bf16.mxu0 0
      %1012 = vmatpush1.bf16.msra.mxu0 0
      %1013 = vmatprep.subr.bf16.mxu0 0
      %1014 = vmatpush1.bf16.msra.mxu0 0
      %1015 = vmatprep.subr.bf16.mxu0 0
      %1016 = vmatpush1.bf16.msra.mxu0 0
      %1017 = vmatprep.subr.bf16.mxu0 0
      %1018 = vmatpush1.bf16.msra.mxu0 0
      %1019 = vmatprep.subr.bf16.mxu0 0
      %1020 = vmatpush1.bf16.msra.mxu0 0
      %1021 = vmatprep.subr.bf16.mxu0 0
      %1022 = vmatpush1.bf16.msra.mxu0 0
      %1023 = vmatprep.subr.bf16.mxu0 0
      %1024 = vmatpush1.bf16.msra.mxu0 0
      %1025 = vmatprep.subr.bf16.mxu0 0
      %1026 = vmatpush1.bf16.msra.mxu0 0
      %1027 = vmatprep.subr.bf16.mxu0 0
      %1028 = vmatpush1.bf16.msra.mxu0 0
      %1029 = vmatprep.subr.bf16.mxu0 0
      %1030 = vmatpush1.bf16.msra.mxu0 0
      %1031 = vmatprep.subr.bf16.mxu0 0
      %1032 = vmatpush1.bf16.msra.mxu0 0
      %1033 = vmatprep.subr.bf16.mxu0 0
      %1034 = vmatpush1.bf16.msra.mxu0 0
      %1035 = vmatprep.subr.bf16.mxu0 0
      %1036 = vmatpush1.bf16.msra.mxu0 0
      %1037 = vmatprep.subr.bf16.mxu0 0
      %1038 = vmatpush1.bf16.msra.mxu0 0
      %1039 = vmatprep.mubr.bf16.mxu0 0
      %1040 = vmatmul.mubr.bf16.gmra.mrb[0].mxu0 %v990
      %v1041 = vpop.f32.mrb[0].mxu0
      %v1042 = vadd.f32 0.0, %v1041
      %v1043 = vpop.f32.mrb[0].mxu0
      %v1044 = vadd.f32 0.0, %v1043
      %v1045 = vpop.f32.mrb[0].mxu0
      %v1046 = vpop.f32.mrb[0].mxu0
      %1047 = vdwg.mxu0
      %1048 = vmatprep.subr.bf16.mxu0 %v1002
      %1049 = vmatpush1.bf16.msra.mxu0 %v999
      %1050 = vmatprep.subr.bf16.mxu0 0
      %1051 = vmatpush1.bf16.msra.mxu0 0
      %1052 = vmatprep.subr.bf16.mxu0 0
      %1053 = vmatpush1.bf16.msra.mxu0 0
      %1054 = vmatprep.subr.bf16.mxu0 0
      %1055 = vmatpush1.bf16.msra.mxu0 0
      %1056 = vmatprep.subr.bf16.mxu0 0
      %1057 = vmatpush1.bf16.msra.mxu0 0
      %1058 = vmatprep.subr.bf16.mxu0 0
      %1059 = vmatpush1.bf16.msra.mxu0 0
      %1060 = vmatprep.subr.bf16.mxu0 0
      %1061 = vmatpush1.bf16.msra.mxu0 0
      %1062 = vmatprep.subr.bf16.mxu0 0
      %1063 = vmatpush1.bf16.msra.mxu0 0
      %1064 = vmatprep.subr.bf16.mxu0 0
      %1065 = vmatpush1.bf16.msra.mxu0 0
      %1066 = vmatprep.subr.bf16.mxu0 0
      %1067 = vmatpush1.bf16.msra.mxu0 0
      %1068 = vmatprep.subr.bf16.mxu0 0
      %1069 = vmatpush1.bf16.msra.mxu0 0
      %1070 = vmatprep.subr.bf16.mxu0 0
      %1071 = vmatpush1.bf16.msra.mxu0 0
      %1072 = vmatprep.subr.bf16.mxu0 0
      %1073 = vmatpush1.bf16.msra.mxu0 0
      %1074 = vmatprep.subr.bf16.mxu0 0
      %1075 = vmatpush1.bf16.msra.mxu0 0
      %1076 = vmatprep.subr.bf16.mxu0 0
      %1077 = vmatpush1.bf16.msra.mxu0 0
      %1078 = vmatprep.subr.bf16.mxu0 0
      %1079 = vmatpush1.bf16.msra.mxu0 0
      %1080 = vmatprep.mubr.bf16.mxu0 0
      %1081 = vmatmul.mubr.bf16.gmra.mrb[0].mxu0 %v990
      %v1082 = vpop.f32.mrb[0].mxu0
      %v1083 = vadd.f32 0.0, %v1082
      %v1084 = vpop.f32.mrb[0].mxu0
      %v1085 = vadd.f32 0.0, %v1084
      %v1086 = vpop.f32.mrb[0].mxu0
      %v1087 = vpop.f32.mrb[0].mxu0
      %1088 = vdwg.mxu0
      %1089 = vmatprep.subr.bf16.mxu0 0
      %1090 = vmatpush1.bf16.msra.mxu0 %v1005
      %1091 = vmatprep.subr.bf16.mxu0 0
      %1092 = vmatpush1.bf16.msra.mxu0 0
      %1093 = vmatprep.subr.bf16.mxu0 0
      %1094 = vmatpush1.bf16.msra.mxu0 0
      %1095 = vmatprep.subr.bf16.mxu0 0
      %1096 = vmatpush1.bf16.msra.mxu0 0
      %1097 = vmatprep.subr.bf16.mxu0 0
      %1098 = vmatpush1.bf16.msra.mxu0 0
      %1099 = vmatprep.subr.bf16.mxu0 0
      %1100 = vmatpush1.bf16.msra.mxu0 0
      %1101 = vmatprep.subr.bf16.mxu0 0
      %1102 = vmatpush1.bf16.msra.mxu0 0
      %1103 = vmatprep.subr.bf16.mxu0 0
      %1104 = vmatpush1.bf16.msra.mxu0 0
      %1105 = vmatprep.subr.bf16.mxu0 0
      %1106 = vmatpush1.bf16.msra.mxu0 0
      %1107 = vmatprep.subr.bf16.mxu0 0
      %1108 = vmatpush1.bf16.msra.mxu0 0
      %1109 = vmatprep.subr.bf16.mxu0 0
      %1110 = vmatpush1.bf16.msra.mxu0 0
      %1111 = vmatprep.subr.bf16.mxu0 0
      %1112 = vmatpush1.bf16.msra.mxu0 0
      %1113 = vmatprep.subr.bf16.mxu0 0
      %1114 = vmatpush1.bf16.msra.mxu0 0
      %1115 = vmatprep.subr.bf16.mxu0 0
      %1116 = vmatpush1.bf16.msra.mxu0 0
      %1117 = vmatprep.subr.bf16.mxu0 0
      %1118 = vmatpush1.bf16.msra.mxu0 0
      %1119 = vmatprep.subr.bf16.mxu0 0
      %1120 = vmatpush1.bf16.msra.mxu0 0
      %1121 = vmatprep.mubr.bf16.mxu0 0
      %1122 = vmatmul.mubr.bf16.gmra.mrb[0].mxu0 %v990
      %v1123 = vpop.f32.mrb[0].mxu0
      %v1124 = vadd.f32 0.0, %v1123
      %v1125 = vpop.f32.mrb[0].mxu0
      %v1126 = vpop.f32.mrb[0].mxu0
      %v1127 = vpop.f32.mrb[0].mxu0
      %1128 = vdwg.mxu0
      %v1129 = vadd.f32 %v964, %v1042
      %v1130 = vadd.f32 %v965, %v1044
      %v1131 = vadd.f32 %v966, %v1083
      %v1132 = vadd.f32 %v967, %v1085
      %v1133 = vadd.f32 %v968, %v1124
      %s1134 = scalar_lea.vmem %s2, 20
      %v1135 = vld [vmem:[%s1134] sm:$0xf]
      %1136 = vrot.lane.b32.xlu0 %v315, 92
      %v1137 = vpop.permute.xlu0 %1136
      %1138 = vrot.lane.b32.xlu0 %v323, 92
      %v1139 = vpop.permute.xlu0 %1138
      %1140 = vrot.lane.b32.xlu0 %v322, 92
      %v1141 = vpop.permute.xlu0 %1140
      %1142 = vrot.lane.b32.xlu0 %v324, 92
      %v1143 = vpop.permute.xlu0 %1142
      %1144 = vrot.lane.b32.xlu0 %v331, 92
      %v1145 = vpop.permute.xlu0 %1144
      %1146 = vrot.lane.b32.xlu0 %v305, 92
      %v1147 = vpop.permute.xlu0 %1146
      %vm1148 = vcmask 752640
      %v1149 = vsel %vm1148, %v1137, %v1139
      %v1150 = vsel %vm1148, %v1139, %v1141
      %v1151 = vsel %vm1148, %v1141, %v1143
      %v1152 = vsel %vm1148, %v1143, %v1145
      %v1153 = vsel %vm1148, %v1145, %v1147
      %v1155 = vsel %vm354, %v1135, 0
      %v1158 = vand.u32 %v1149, %v361
      %v1161 = vand.u32 %v1150, %v361
      %v1164 = vand.u32 %v1151, %v361
      %v1167 = vand.u32 %v1152, %v361
      %v1170 = vand.u32 %v1153, %v361
      %1172 = vmatprep.subr.bf16.mxu0 %v1161
      %1173 = vmatpush1.bf16.msra.mxu0 %v1158
      %1174 = vmatprep.subr.bf16.mxu0 0
      %1175 = vmatpush1.bf16.msra.mxu0 0
      %1176 = vmatprep.subr.bf16.mxu0 0
      %1177 = vmatpush1.bf16.msra.mxu0 0
      %1178 = vmatprep.subr.bf16.mxu0 0
      %1179 = vmatpush1.bf16.msra.mxu0 0
      %1180 = vmatprep.subr.bf16.mxu0 0
      %1181 = vmatpush1.bf16.msra.mxu0 0
      %1182 = vmatprep.subr.bf16.mxu0 0
      %1183 = vmatpush1.bf16.msra.mxu0 0
      %1184 = vmatprep.subr.bf16.mxu0 0
      %1185 = vmatpush1.bf16.msra.mxu0 0
      %1186 = vmatprep.subr.bf16.mxu0 0
      %1187 = vmatpush1.bf16.msra.mxu0 0
      %1188 = vmatprep.subr.bf16.mxu0 0
      %1189 = vmatpush1.bf16.msra.mxu0 0
      %1190 = vmatprep.subr.bf16.mxu0 0
      %1191 = vmatpush1.bf16.msra.mxu0 0
      %1192 = vmatprep.subr.bf16.mxu0 0
      %1193 = vmatpush1.bf16.msra.mxu0 0
      %1194 = vmatprep.subr.bf16.mxu0 0
      %1195 = vmatpush1.bf16.msra.mxu0 0
      %1196 = vmatprep.subr.bf16.mxu0 0
      %1197 = vmatpush1.bf16.msra.mxu0 0
      %1198 = vmatprep.subr.bf16.mxu0 0
      %1199 = vmatpush1.bf16.msra.mxu0 0
      %1200 = vmatprep.subr.bf16.mxu0 0
      %1201 = vmatpush1.bf16.msra.mxu0 0
      %1202 = vmatprep.subr.bf16.mxu0 0
      %1203 = vmatpush1.bf16.msra.mxu0 0
      %1204 = vmatprep.mubr.bf16.mxu0 0
      %1205 = vmatmul.mubr.bf16.gmra.mrb[0].mxu0 %v1155
      %v1206 = vpop.f32.mrb[0].mxu0
      %v1207 = vadd.f32 0.0, %v1206
      %v1208 = vpop.f32.mrb[0].mxu0
      %v1209 = vadd.f32 0.0, %v1208
      %v1210 = vpop.f32.mrb[0].mxu0
      %v1211 = vpop.f32.mrb[0].mxu0
      %1212 = vdwg.mxu0
      %1213 = vmatprep.subr.bf16.mxu0 %v1167
      %1214 = vmatpush1.bf16.msra.mxu0 %v1164
      %1215 = vmatprep.subr.bf16.mxu0 0
      %1216 = vmatpush1.bf16.msra.mxu0 0
      %1217 = vmatprep.subr.bf16.mxu0 0
      %1218 = vmatpush1.bf16.msra.mxu0 0
      %1219 = vmatprep.subr.bf16.mxu0 0
      %1220 = vmatpush1.bf16.msra.mxu0 0
      %1221 = vmatprep.subr.bf16.mxu0 0
      %1222 = vmatpush1.bf16.msra.mxu0 0
      %1223 = vmatprep.subr.bf16.mxu0 0
      %1224 = vmatpush1.bf16.msra.mxu0 0
      %1225 = vmatprep.subr.bf16.mxu0 0
      %1226 = vmatpush1.bf16.msra.mxu0 0
      %1227 = vmatprep.subr.bf16.mxu0 0
      %1228 = vmatpush1.bf16.msra.mxu0 0
      %1229 = vmatprep.subr.bf16.mxu0 0
      %1230 = vmatpush1.bf16.msra.mxu0 0
      %1231 = vmatprep.subr.bf16.mxu0 0
      %1232 = vmatpush1.bf16.msra.mxu0 0
      %1233 = vmatprep.subr.bf16.mxu0 0
      %1234 = vmatpush1.bf16.msra.mxu0 0
      %1235 = vmatprep.subr.bf16.mxu0 0
      %1236 = vmatpush1.bf16.msra.mxu0 0
      %1237 = vmatprep.subr.bf16.mxu0 0
      %1238 = vmatpush1.bf16.msra.mxu0 0
      %1239 = vmatprep.subr.bf16.mxu0 0
      %1240 = vmatpush1.bf16.msra.mxu0 0
      %1241 = vmatprep.subr.bf16.mxu0 0
      %1242 = vmatpush1.bf16.msra.mxu0 0
      %1243 = vmatprep.subr.bf16.mxu0 0
      %1244 = vmatpush1.bf16.msra.mxu0 0
      %1245 = vmatprep.mubr.bf16.mxu0 0
      %1246 = vmatmul.mubr.bf16.gmra.mrb[0].mxu0 %v1155
      %v1247 = vpop.f32.mrb[0].mxu0
      %v1248 = vadd.f32 0.0, %v1247
      %v1249 = vpop.f32.mrb[0].mxu0
      %v1250 = vadd.f32 0.0, %v1249
      %v1251 = vpop.f32.mrb[0].mxu0
      %v1252 = vpop.f32.mrb[0].mxu0
      %1253 = vdwg.mxu0
      %1254 = vmatprep.subr.bf16.mxu0 0
      %1255 = vmatpush1.bf16.msra.mxu0 %v1170
      %1256 = vmatprep.subr.bf16.mxu0 0
      %1257 = vmatpush1.bf16.msra.mxu0 0
      %1258 = vmatprep.subr.bf16.mxu0 0
      %1259 = vmatpush1.bf16.msra.mxu0 0
      %1260 = vmatprep.subr.bf16.mxu0 0
      %1261 = vmatpush1.bf16.msra.mxu0 0
      %1262 = vmatprep.subr.bf16.mxu0 0
      %1263 = vmatpush1.bf16.msra.mxu0 0
      %1264 = vmatprep.subr.bf16.mxu0 0
      %1265 = vmatpush1.bf16.msra.mxu0 0
      %1266 = vmatprep.subr.bf16.mxu0 0
      %1267 = vmatpush1.bf16.msra.mxu0 0
      %1268 = vmatprep.subr.bf16.mxu0 0
      %1269 = vmatpush1.bf16.msra.mxu0 0
      %1270 = vmatprep.subr.bf16.mxu0 0
      %1271 = vmatpush1.bf16.msra.mxu0 0
      %1272 = vmatprep.subr.bf16.mxu0 0
      %1273 = vmatpush1.bf16.msra.mxu0 0
      %1274 = vmatprep.subr.bf16.mxu0 0
      %1275 = vmatpush1.bf16.msra.mxu0 0
      %1276 = vmatprep.subr.bf16.mxu0 0
      %1277 = vmatpush1.bf16.msra.mxu0 0
      %1278 = vmatprep.subr.bf16.mxu0 0
      %1279 = vmatpush1.bf16.msra.mxu0 0
      %1280 = vmatprep.subr.bf16.mxu0 0
      %1281 = vmatpush1.bf16.msra.mxu0 0
      %1282 = vmatprep.subr.bf16.mxu0 0
      %1283 = vmatpush1.bf16.msra.mxu0 0
      %1284 = vmatprep.subr.bf16.mxu0 0
      %1285 = vmatpush1.bf16.msra.mxu0 0
      %1286 = vmatprep.mubr.bf16.mxu0 0
      %1287 = vmatmul.mubr.bf16.gmra.mrb[0].mxu0 %v1155
      %v1288 = vpop.f32.mrb[0].mxu0
      %v1289 = vadd.f32 0.0, %v1288
      %v1290 = vpop.f32.mrb[0].mxu0
      %v1291 = vpop.f32.mrb[0].mxu0
      %v1292 = vpop.f32.mrb[0].mxu0
      %1293 = vdwg.mxu0
      %v1294 = vadd.f32 %v1129, %v1207
      %v1295 = vadd.f32 %v1130, %v1209
      %v1296 = vadd.f32 %v1131, %v1248
      %v1297 = vadd.f32 %v1132, %v1250
      %v1298 = vadd.f32 %v1133, %v1289
      %s1299 = scalar_lea.vmem %s2, 24
      %v1300 = vld [vmem:[%s1299] sm:$0xf]
      %1301 = vrot.lane.b32.xlu0 %v315, 60
      %v1302 = vpop.permute.xlu0 %1301
      %1303 = vrot.lane.b32.xlu0 %v323, 60
      %v1304 = vpop.permute.xlu0 %1303
      %1305 = vrot.lane.b32.xlu0 %v322, 60
      %v1306 = vpop.permute.xlu0 %1305
      %1307 = vrot.lane.b32.xlu0 %v324, 60
      %v1308 = vpop.permute.xlu0 %1307
      %1309 = vrot.lane.b32.xlu0 %v331, 60
      %v1310 = vpop.permute.xlu0 %1309
      %1311 = vrot.lane.b32.xlu0 %v305, 60
      %v1312 = vpop.permute.xlu0 %1311
      %vm1313 = vcmask 490496
      %v1314 = vsel %vm1313, %v1302, %v1304
      %v1315 = vsel %vm1313, %v1304, %v1306
      %v1316 = vsel %vm1313, %v1306, %v1308
      %v1317 = vsel %vm1313, %v1308, %v1310
      %v1318 = vsel %vm1313, %v1310, %v1312
      %v1320 = vsel %vm354, %v1300, 0
      %v1323 = vand.u32 %v1314, %v361
      %v1326 = vand.u32 %v1315, %v361
      %v1329 = vand.u32 %v1316, %v361
      %v1332 = vand.u32 %v1317, %v361
      %v1335 = vand.u32 %v1318, %v361
      %1337 = vmatprep.subr.bf16.mxu0 %v1326
      %1338 = vmatpush1.bf16.msra.mxu0 %v1323
      %1339 = vmatprep.subr.bf16.mxu0 0
      %1340 = vmatpush1.bf16.msra.mxu0 0
      %1341 = vmatprep.subr.bf16.mxu0 0
      %1342 = vmatpush1.bf16.msra.mxu0 0
      %1343 = vmatprep.subr.bf16.mxu0 0
      %1344 = vmatpush1.bf16.msra.mxu0 0
      %1345 = vmatprep.subr.bf16.mxu0 0
      %1346 = vmatpush1.bf16.msra.mxu0 0
      %1347 = vmatprep.subr.bf16.mxu0 0
      %1348 = vmatpush1.bf16.msra.mxu0 0
      %1349 = vmatprep.subr.bf16.mxu0 0
      %1350 = vmatpush1.bf16.msra.mxu0 0
      %1351 = vmatprep.subr.bf16.mxu0 0
      %1352 = vmatpush1.bf16.msra.mxu0 0
      %1353 = vmatprep.subr.bf16.mxu0 0
      %1354 = vmatpush1.bf16.msra.mxu0 0
      %1355 = vmatprep.subr.bf16.mxu0 0
      %1356 = vmatpush1.bf16.msra.mxu0 0
      %1357 = vmatprep.subr.bf16.mxu0 0
      %1358 = vmatpush1.bf16.msra.mxu0 0
      %1359 = vmatprep.subr.bf16.mxu0 0
      %1360 = vmatpush1.bf16.msra.mxu0 0
      %1361 = vmatprep.subr.bf16.mxu0 0
      %1362 = vmatpush1.bf16.msra.mxu0 0
      %1363 = vmatprep.subr.bf16.mxu0 0
      %1364 = vmatpush1.bf16.msra.mxu0 0
      %1365 = vmatprep.subr.bf16.mxu0 0
      %1366 = vmatpush1.bf16.msra.mxu0 0
      %1367 = vmatprep.subr.bf16.mxu0 0
      %1368 = vmatpush1.bf16.msra.mxu0 0
      %1369 = vmatprep.mubr.bf16.mxu0 0
      %1370 = vmatmul.mubr.bf16.gmra.mrb[0].mxu0 %v1320
      %v1371 = vpop.f32.mrb[0].mxu0
      %v1372 = vadd.f32 0.0, %v1371
      %v1373 = vpop.f32.mrb[0].mxu0
      %v1374 = vadd.f32 0.0, %v1373
      %v1375 = vpop.f32.mrb[0].mxu0
      %v1376 = vpop.f32.mrb[0].mxu0
      %1377 = vdwg.mxu0
      %1378 = vmatprep.subr.bf16.mxu0 %v1332
      %1379 = vmatpush1.bf16.msra.mxu0 %v1329
      %1380 = vmatprep.subr.bf16.mxu0 0
      %1381 = vmatpush1.bf16.msra.mxu0 0
      %1382 = vmatprep.subr.bf16.mxu0 0
      %1383 = vmatpush1.bf16.msra.mxu0 0
      %1384 = vmatprep.subr.bf16.mxu0 0
      %1385 = vmatpush1.bf16.msra.mxu0 0
      %1386 = vmatprep.subr.bf16.mxu0 0
      %1387 = vmatpush1.bf16.msra.mxu0 0
      %1388 = vmatprep.subr.bf16.mxu0 0
      %1389 = vmatpush1.bf16.msra.mxu0 0
      %1390 = vmatprep.subr.bf16.mxu0 0
      %1391 = vmatpush1.bf16.msra.mxu0 0
      %1392 = vmatprep.subr.bf16.mxu0 0
      %1393 = vmatpush1.bf16.msra.mxu0 0
      %1394 = vmatprep.subr.bf16.mxu0 0
      %1395 = vmatpush1.bf16.msra.mxu0 0
      %1396 = vmatprep.subr.bf16.mxu0 0
      %1397 = vmatpush1.bf16.msra.mxu0 0
      %1398 = vmatprep.subr.bf16.mxu0 0
      %1399 = vmatpush1.bf16.msra.mxu0 0
      %1400 = vmatprep.subr.bf16.mxu0 0
      %1401 = vmatpush1.bf16.msra.mxu0 0
      %1402 = vmatprep.subr.bf16.mxu0 0
      %1403 = vmatpush1.bf16.msra.mxu0 0
      %1404 = vmatprep.subr.bf16.mxu0 0
      %1405 = vmatpush1.bf16.msra.mxu0 0
      %1406 = vmatprep.subr.bf16.mxu0 0
      %1407 = vmatpush1.bf16.msra.mxu0 0
      %1408 = vmatprep.subr.bf16.mxu0 0
      %1409 = vmatpush1.bf16.msra.mxu0 0
      %1410 = vmatprep.mubr.bf16.mxu0 0
      %1411 = vmatmul.mubr.bf16.gmra.mrb[0].mxu0 %v1320
      %v1412 = vpop.f32.mrb[0].mxu0
      %v1413 = vadd.f32 0.0, %v1412
      %v1414 = vpop.f32.mrb[0].mxu0
      %v1415 = vadd.f32 0.0, %v1414
      %v1416 = vpop.f32.mrb[0].mxu0
      %v1417 = vpop.f32.mrb[0].mxu0
      %1418 = vdwg.mxu0
      %1419 = vmatprep.subr.bf16.mxu0 0
      %1420 = vmatpush1.bf16.msra.mxu0 %v1335
      %1421 = vmatprep.subr.bf16.mxu0 0
      %1422 = vmatpush1.bf16.msra.mxu0 0
      %1423 = vmatprep.subr.bf16.mxu0 0
      %1424 = vmatpush1.bf16.msra.mxu0 0
      %1425 = vmatprep.subr.bf16.mxu0 0
      %1426 = vmatpush1.bf16.msra.mxu0 0
      %1427 = vmatprep.subr.bf16.mxu0 0
      %1428 = vmatpush1.bf16.msra.mxu0 0
      %1429 = vmatprep.subr.bf16.mxu0 0
      %1430 = vmatpush1.bf16.msra.mxu0 0
      %1431 = vmatprep.subr.bf16.mxu0 0
      %1432 = vmatpush1.bf16.msra.mxu0 0
      %1433 = vmatprep.subr.bf16.mxu0 0
      %1434 = vmatpush1.bf16.msra.mxu0 0
      %1435 = vmatprep.subr.bf16.mxu0 0
      %1436 = vmatpush1.bf16.msra.mxu0 0
      %1437 = vmatprep.subr.bf16.mxu0 0
      %1438 = vmatpush1.bf16.msra.mxu0 0
      %1439 = vmatprep.subr.bf16.mxu0 0
      %1440 = vmatpush1.bf16.msra.mxu0 0
      %1441 = vmatprep.subr.bf16.mxu0 0
      %1442 = vmatpush1.bf16.msra.mxu0 0
      %1443 = vmatprep.subr.bf16.mxu0 0
      %1444 = vmatpush1.bf16.msra.mxu0 0
      %1445 = vmatprep.subr.bf16.mxu0 0
      %1446 = vmatpush1.bf16.msra.mxu0 0
      %1447 = vmatprep.subr.bf16.mxu0 0
      %1448 = vmatpush1.bf16.msra.mxu0 0
      %1449 = vmatprep.subr.bf16.mxu0 0
      %1450 = vmatpush1.bf16.msra.mxu0 0
      %1451 = vmatprep.mubr.bf16.mxu0 0
      %1452 = vmatmul.mubr.bf16.gmra.mrb[0].mxu0 %v1320
      %v1453 = vpop.f32.mrb[0].mxu0
      %v1454 = vadd.f32 0.0, %v1453
      %v1455 = vpop.f32.mrb[0].mxu0
      %v1456 = vpop.f32.mrb[0].mxu0
      %v1457 = vpop.f32.mrb[0].mxu0
      %1458 = vdwg.mxu0
      %v1459 = vadd.f32 %v1294, %v1372
      %v1460 = vadd.f32 %v1295, %v1374
      %v1461 = vadd.f32 %v1296, %v1413
      %v1462 = vadd.f32 %v1297, %v1415
      %v1463 = vadd.f32 %v1298, %v1454
      %s1464 = scalar_lea.vmem %s2, 28
      %v1465 = vld [vmem:[%s1464] sm:$0xf]
      %1466 = vrot.lane.b32.xlu0 %v315, 59
      %v1467 = vpop.permute.xlu0 %1466
      %1468 = vrot.lane.b32.xlu0 %v323, 59
      %v1469 = vpop.permute.xlu0 %1468
      %1470 = vrot.lane.b32.xlu0 %v322, 59
      %v1471 = vpop.permute.xlu0 %1470
      %1472 = vrot.lane.b32.xlu0 %v324, 59
      %v1473 = vpop.permute.xlu0 %1472
      %1474 = vrot.lane.b32.xlu0 %v331, 59
      %v1475 = vpop.permute.xlu0 %1474
      %1476 = vrot.lane.b32.xlu0 %v305, 59
      %v1477 = vpop.permute.xlu0 %1476
      %vm1478 = vcmask 482304
      %v1479 = vsel %vm1478, %v1467, %v1469
      %v1480 = vsel %vm1478, %v1469, %v1471
      %v1481 = vsel %vm1478, %v1471, %v1473
      %v1482 = vsel %vm1478, %v1473, %v1475
      %v1483 = vsel %vm1478, %v1475, %v1477
      %v1485 = vsel %vm354, %v1465, 0
      %v1488 = vand.u32 %v1479, %v361
      %v1491 = vand.u32 %v1480, %v361
      %v1494 = vand.u32 %v1481, %v361
      %v1497 = vand.u32 %v1482, %v361
      %v1500 = vand.u32 %v1483, %v361
      %1502 = vmatprep.subr.bf16.mxu0 %v1491
      %1503 = vmatpush1.bf16.msra.mxu0 %v1488
      %1504 = vmatprep.subr.bf16.mxu0 0
      %1505 = vmatpush1.bf16.msra.mxu0 0
      %1506 = vmatprep.subr.bf16.mxu0 0
      %1507 = vmatpush1.bf16.msra.mxu0 0
      %1508 = vmatprep.subr.bf16.mxu0 0
      %1509 = vmatpush1.bf16.msra.mxu0 0
      %1510 = vmatprep.subr.bf16.mxu0 0
      %1511 = vmatpush1.bf16.msra.mxu0 0
      %1512 = vmatprep.subr.bf16.mxu0 0
      %1513 = vmatpush1.bf16.msra.mxu0 0
      %1514 = vmatprep.subr.bf16.mxu0 0
      %1515 = vmatpush1.bf16.msra.mxu0 0
      %1516 = vmatprep.subr.bf16.mxu0 0
      %1517 = vmatpush1.bf16.msra.mxu0 0
      %1518 = vmatprep.subr.bf16.mxu0 0
      %1519 = vmatpush1.bf16.msra.mxu0 0
      %1520 = vmatprep.subr.bf16.mxu0 0
      %1521 = vmatpush1.bf16.msra.mxu0 0
      %1522 = vmatprep.subr.bf16.mxu0 0
      %1523 = vmatpush1.bf16.msra.mxu0 0
      %1524 = vmatprep.subr.bf16.mxu0 0
      %1525 = vmatpush1.bf16.msra.mxu0 0
      %1526 = vmatprep.subr.bf16.mxu0 0
      %1527 = vmatpush1.bf16.msra.mxu0 0
      %1528 = vmatprep.subr.bf16.mxu0 0
      %1529 = vmatpush1.bf16.msra.mxu0 0
      %1530 = vmatprep.subr.bf16.mxu0 0
      %1531 = vmatpush1.bf16.msra.mxu0 0
      %1532 = vmatprep.subr.bf16.mxu0 0
      %1533 = vmatpush1.bf16.msra.mxu0 0
      %1534 = vmatprep.mubr.bf16.mxu0 0
      %1535 = vmatmul.mubr.bf16.gmra.mrb[0].mxu0 %v1485
      %v1536 = vpop.f32.mrb[0].mxu0
      %v1537 = vadd.f32 0.0, %v1536
      %v1538 = vpop.f32.mrb[0].mxu0
      %v1539 = vadd.f32 0.0, %v1538
      %v1540 = vpop.f32.mrb[0].mxu0
      %v1541 = vpop.f32.mrb[0].mxu0
      %1542 = vdwg.mxu0
      %1543 = vmatprep.subr.bf16.mxu0 %v1497
      %1544 = vmatpush1.bf16.msra.mxu0 %v1494
      %1545 = vmatprep.subr.bf16.mxu0 0
      %1546 = vmatpush1.bf16.msra.mxu0 0
      %1547 = vmatprep.subr.bf16.mxu0 0
      %1548 = vmatpush1.bf16.msra.mxu0 0
      %1549 = vmatprep.subr.bf16.mxu0 0
      %1550 = vmatpush1.bf16.msra.mxu0 0
      %1551 = vmatprep.subr.bf16.mxu0 0
      %1552 = vmatpush1.bf16.msra.mxu0 0
      %1553 = vmatprep.subr.bf16.mxu0 0
      %1554 = vmatpush1.bf16.msra.mxu0 0
      %1555 = vmatprep.subr.bf16.mxu0 0
      %1556 = vmatpush1.bf16.msra.mxu0 0
      %1557 = vmatprep.subr.bf16.mxu0 0
      %1558 = vmatpush1.bf16.msra.mxu0 0
      %1559 = vmatprep.subr.bf16.mxu0 0
      %1560 = vmatpush1.bf16.msra.mxu0 0
      %1561 = vmatprep.subr.bf16.mxu0 0
      %1562 = vmatpush1.bf16.msra.mxu0 0
      %1563 = vmatprep.subr.bf16.mxu0 0
      %1564 = vmatpush1.bf16.msra.mxu0 0
      %1565 = vmatprep.subr.bf16.mxu0 0
      %1566 = vmatpush1.bf16.msra.mxu0 0
      %1567 = vmatprep.subr.bf16.mxu0 0
      %1568 = vmatpush1.bf16.msra.mxu0 0
      %1569 = vmatprep.subr.bf16.mxu0 0
      %1570 = vmatpush1.bf16.msra.mxu0 0
      %1571 = vmatprep.subr.bf16.mxu0 0
      %1572 = vmatpush1.bf16.msra.mxu0 0
      %1573 = vmatprep.subr.bf16.mxu0 0
      %1574 = vmatpush1.bf16.msra.mxu0 0
      %1575 = vmatprep.mubr.bf16.mxu0 0
      %1576 = vmatmul.mubr.bf16.gmra.mrb[0].mxu0 %v1485
      %v1577 = vpop.f32.mrb[0].mxu0
      %v1578 = vadd.f32 0.0, %v1577
      %v1579 = vpop.f32.mrb[0].mxu0
      %v1580 = vadd.f32 0.0, %v1579
      %v1581 = vpop.f32.mrb[0].mxu0
      %v1582 = vpop.f32.mrb[0].mxu0
      %1583 = vdwg.mxu0
      %1584 = vmatprep.subr.bf16.mxu0 0
      %1585 = vmatpush1.bf16.msra.mxu0 %v1500
      %1586 = vmatprep.subr.bf16.mxu0 0
      %1587 = vmatpush1.bf16.msra.mxu0 0
      %1588 = vmatprep.subr.bf16.mxu0 0
      %1589 = vmatpush1.bf16.msra.mxu0 0
      %1590 = vmatprep.subr.bf16.mxu0 0
      %1591 = vmatpush1.bf16.msra.mxu0 0
      %1592 = vmatprep.subr.bf16.mxu0 0
      %1593 = vmatpush1.bf16.msra.mxu0 0
      %1594 = vmatprep.subr.bf16.mxu0 0
      %1595 = vmatpush1.bf16.msra.mxu0 0
      %1596 = vmatprep.subr.bf16.mxu0 0
      %1597 = vmatpush1.bf16.msra.mxu0 0
      %1598 = vmatprep.subr.bf16.mxu0 0
      %1599 = vmatpush1.bf16.msra.mxu0 0
      %1600 = vmatprep.subr.bf16.mxu0 0
      %1601 = vmatpush1.bf16.msra.mxu0 0
      %1602 = vmatprep.subr.bf16.mxu0 0
      %1603 = vmatpush1.bf16.msra.mxu0 0
      %1604 = vmatprep.subr.bf16.mxu0 0
      %1605 = vmatpush1.bf16.msra.mxu0 0
      %1606 = vmatprep.subr.bf16.mxu0 0
      %1607 = vmatpush1.bf16.msra.mxu0 0
      %1608 = vmatprep.subr.bf16.mxu0 0
      %1609 = vmatpush1.bf16.msra.mxu0 0
      %1610 = vmatprep.subr.bf16.mxu0 0
      %1611 = vmatpush1.bf16.msra.mxu0 0
      %1612 = vmatprep.subr.bf16.mxu0 0
      %1613 = vmatpush1.bf16.msra.mxu0 0
      %1614 = vmatprep.subr.bf16.mxu0 0
      %1615 = vmatpush1.bf16.msra.mxu0 0
      %1616 = vmatprep.mubr.bf16.mxu0 0
      %1617 = vmatmul.mubr.bf16.gmra.mrb[0].mxu0 %v1485
      %v1618 = vpop.f32.mrb[0].mxu0
      %v1619 = vadd.f32 0.0, %v1618
      %v1620 = vpop.f32.mrb[0].mxu0
      %v1621 = vpop.f32.mrb[0].mxu0
      %v1622 = vpop.f32.mrb[0].mxu0
      %1623 = vdwg.mxu0
      %v1624 = vadd.f32 %v1459, %v1537
      %v1625 = vadd.f32 %v1460, %v1539
      %v1626 = vadd.f32 %v1461, %v1578
      %v1627 = vadd.f32 %v1462, %v1580
      %v1628 = vadd.f32 %v1463, %v1619
      %s1629 = scalar_lea.vmem %s2, 32
      %v1630 = vld [vmem:[%s1629] sm:$0xf]
      %1631 = vrot.lane.b32.xlu0 %v315, 58
      %v1632 = vpop.permute.xlu0 %1631
      %1633 = vrot.lane.b32.xlu0 %v323, 58
      %v1634 = vpop.permute.xlu0 %1633
      %1635 = vrot.lane.b32.xlu0 %v322, 58
      %v1636 = vpop.permute.xlu0 %1635
      %1637 = vrot.lane.b32.xlu0 %v324, 58
      %v1638 = vpop.permute.xlu0 %1637
      %1639 = vrot.lane.b32.xlu0 %v331, 58
      %v1640 = vpop.permute.xlu0 %1639
      %1641 = vrot.lane.b32.xlu0 %v305, 58
      %v1642 = vpop.permute.xlu0 %1641
      %vm1643 = vcmask 474112
      %v1644 = vsel %vm1643, %v1632, %v1634
      %v1645 = vsel %vm1643, %v1634, %v1636
      %v1646 = vsel %vm1643, %v1636, %v1638
      %v1647 = vsel %vm1643, %v1638, %v1640
      %v1648 = vsel %vm1643, %v1640, %v1642
      %v1650 = vsel %vm354, %v1630, 0
      %v1653 = vand.u32 %v1644, %v361
      %v1656 = vand.u32 %v1645, %v361
      %v1659 = vand.u32 %v1646, %v361
      %v1662 = vand.u32 %v1647, %v361
      %v1665 = vand.u32 %v1648, %v361
      %1667 = vmatprep.subr.bf16.mxu0 %v1656
      %1668 = vmatpush1.bf16.msra.mxu0 %v1653
      %1669 = vmatprep.subr.bf16.mxu0 0
      %1670 = vmatpush1.bf16.msra.mxu0 0
      %1671 = vmatprep.subr.bf16.mxu0 0
      %1672 = vmatpush1.bf16.msra.mxu0 0
      %1673 = vmatprep.subr.bf16.mxu0 0
      %1674 = vmatpush1.bf16.msra.mxu0 0
      %1675 = vmatprep.subr.bf16.mxu0 0
      %1676 = vmatpush1.bf16.msra.mxu0 0
      %1677 = vmatprep.subr.bf16.mxu0 0
      %1678 = vmatpush1.bf16.msra.mxu0 0
      %1679 = vmatprep.subr.bf16.mxu0 0
      %1680 = vmatpush1.bf16.msra.mxu0 0
      %1681 = vmatprep.subr.bf16.mxu0 0
      %1682 = vmatpush1.bf16.msra.mxu0 0
      %1683 = vmatprep.subr.bf16.mxu0 0
      %1684 = vmatpush1.bf16.msra.mxu0 0
      %1685 = vmatprep.subr.bf16.mxu0 0
      %1686 = vmatpush1.bf16.msra.mxu0 0
      %1687 = vmatprep.subr.bf16.mxu0 0
      %1688 = vmatpush1.bf16.msra.mxu0 0
      %1689 = vmatprep.subr.bf16.mxu0 0
      %1690 = vmatpush1.bf16.msra.mxu0 0
      %1691 = vmatprep.subr.bf16.mxu0 0
      %1692 = vmatpush1.bf16.msra.mxu0 0
      %1693 = vmatprep.subr.bf16.mxu0 0
      %1694 = vmatpush1.bf16.msra.mxu0 0
      %1695 = vmatprep.subr.bf16.mxu0 0
      %1696 = vmatpush1.bf16.msra.mxu0 0
      %1697 = vmatprep.subr.bf16.mxu0 0
      %1698 = vmatpush1.bf16.msra.mxu0 0
      %1699 = vmatprep.mubr.bf16.mxu0 0
      %1700 = vmatmul.mubr.bf16.gmra.mrb[0].mxu0 %v1650
      %v1701 = vpop.f32.mrb[0].mxu0
      %v1702 = vadd.f32 0.0, %v1701
      %v1703 = vpop.f32.mrb[0].mxu0
      %v1704 = vadd.f32 0.0, %v1703
      %v1705 = vpop.f32.mrb[0].mxu0
      %v1706 = vpop.f32.mrb[0].mxu0
      %1707 = vdwg.mxu0
      %1708 = vmatprep.subr.bf16.mxu0 %v1662
      %1709 = vmatpush1.bf16.msra.mxu0 %v1659
      %1710 = vmatprep.subr.bf16.mxu0 0
      %1711 = vmatpush1.bf16.msra.mxu0 0
      %1712 = vmatprep.subr.bf16.mxu0 0
      %1713 = vmatpush1.bf16.msra.mxu0 0
      %1714 = vmatprep.subr.bf16.mxu0 0
      %1715 = vmatpush1.bf16.msra.mxu0 0
      %1716 = vmatprep.subr.bf16.mxu0 0
      %1717 = vmatpush1.bf16.msra.mxu0 0
      %1718 = vmatprep.subr.bf16.mxu0 0
      %1719 = vmatpush1.bf16.msra.mxu0 0
      %1720 = vmatprep.subr.bf16.mxu0 0
      %1721 = vmatpush1.bf16.msra.mxu0 0
      %1722 = vmatprep.subr.bf16.mxu0 0
      %1723 = vmatpush1.bf16.msra.mxu0 0
      %1724 = vmatprep.subr.bf16.mxu0 0
      %1725 = vmatpush1.bf16.msra.mxu0 0
      %1726 = vmatprep.subr.bf16.mxu0 0
      %1727 = vmatpush1.bf16.msra.mxu0 0
      %1728 = vmatprep.subr.bf16.mxu0 0
      %1729 = vmatpush1.bf16.msra.mxu0 0
      %1730 = vmatprep.subr.bf16.mxu0 0
      %1731 = vmatpush1.bf16.msra.mxu0 0
      %1732 = vmatprep.subr.bf16.mxu0 0
      %1733 = vmatpush1.bf16.msra.mxu0 0
      %1734 = vmatprep.subr.bf16.mxu0 0
      %1735 = vmatpush1.bf16.msra.mxu0 0
      %1736 = vmatprep.subr.bf16.mxu0 0
      %1737 = vmatpush1.bf16.msra.mxu0 0
      %1738 = vmatprep.subr.bf16.mxu0 0
      %1739 = vmatpush1.bf16.msra.mxu0 0
      %1740 = vmatprep.mubr.bf16.mxu0 0
      %1741 = vmatmul.mubr.bf16.gmra.mrb[0].mxu0 %v1650
      %v1742 = vpop.f32.mrb[0].mxu0
      %v1743 = vadd.f32 0.0, %v1742
      %v1744 = vpop.f32.mrb[0].mxu0
      %v1745 = vadd.f32 0.0, %v1744
      %v1746 = vpop.f32.mrb[0].mxu0
      %v1747 = vpop.f32.mrb[0].mxu0
      %1748 = vdwg.mxu0
      %1749 = vmatprep.subr.bf16.mxu0 0
      %1750 = vmatpush1.bf16.msra.mxu0 %v1665
      %1751 = vmatprep.subr.bf16.mxu0 0
      %1752 = vmatpush1.bf16.msra.mxu0 0
      %1753 = vmatprep.subr.bf16.mxu0 0
      %1754 = vmatpush1.bf16.msra.mxu0 0
      %1755 = vmatprep.subr.bf16.mxu0 0
      %1756 = vmatpush1.bf16.msra.mxu0 0
      %1757 = vmatprep.subr.bf16.mxu0 0
      %1758 = vmatpush1.bf16.msra.mxu0 0
      %1759 = vmatprep.subr.bf16.mxu0 0
      %1760 = vmatpush1.bf16.msra.mxu0 0
      %1761 = vmatprep.subr.bf16.mxu0 0
      %1762 = vmatpush1.bf16.msra.mxu0 0
      %1763 = vmatprep.subr.bf16.mxu0 0
      %1764 = vmatpush1.bf16.msra.mxu0 0
      %1765 = vmatprep.subr.bf16.mxu0 0
      %1766 = vmatpush1.bf16.msra.mxu0 0
      %1767 = vmatprep.subr.bf16.mxu0 0
      %1768 = vmatpush1.bf16.msra.mxu0 0
      %1769 = vmatprep.subr.bf16.mxu0 0
      %1770 = vmatpush1.bf16.msra.mxu0 0
      %1771 = vmatprep.subr.bf16.mxu0 0
      %1772 = vmatpush1.bf16.msra.mxu0 0
      %1773 = vmatprep.subr.bf16.mxu0 0
      %1774 = vmatpush1.bf16.msra.mxu0 0
      %1775 = vmatprep.subr.bf16.mxu0 0
      %1776 = vmatpush1.bf16.msra.mxu0 0
      %1777 = vmatprep.subr.bf16.mxu0 0
      %1778 = vmatpush1.bf16.msra.mxu0 0
      %1779 = vmatprep.subr.bf16.mxu0 0
      %1780 = vmatpush1.bf16.msra.mxu0 0
      %1781 = vmatprep.mubr.bf16.mxu0 0
      %1782 = vmatmul.mubr.bf16.gmra.mrb[0].mxu0 %v1650
      %v1783 = vpop.f32.mrb[0].mxu0
      %v1784 = vadd.f32 0.0, %v1783
      %v1785 = vpop.f32.mrb[0].mxu0
      %v1786 = vpop.f32.mrb[0].mxu0
      %v1787 = vpop.f32.mrb[0].mxu0
      %1788 = vdwg.mxu0
      %v1789 = vadd.f32 %v1624, %v1702
      %v1790 = vadd.f32 %v1625, %v1704
      %v1791 = vadd.f32 %v1626, %v1743
      %v1792 = vadd.f32 %v1627, %v1745
      %v1793 = vadd.f32 %v1628, %v1784
      %v1794 = vld [vmem:[%s3] sm:$0xff]
      %1796 = vset.pattern.permute.xlu0 0
      %1797 = vperm.xlu0 %1796, %v1794
      %v1798 = vpop.permute.xlu0 %1797
      %v1800 = vadd.f32 %v1789, %v1798
      %v1801 = vadd.f32 %v1790, %v1798
      %v1802 = vadd.f32 %v1791, %v1798
      %v1803 = vadd.f32 %v1792, %v1798
      %v1804 = vadd.f32 %v1793, %v1798
      %1805 = vst [vmem:[%s300] sm:$0xff] %v1800
      %1806 = vst [vmem:[%s300 + $0x8] sm:$0xff] %v1801
      %1807 = vst [vmem:[%s300 + $0x10] sm:$0xff] %v1802
      %1808 = vst [vmem:[%s300 + $0x18] sm:$0xff] %v1803
      %1809 = vst [vmem:[%s300 + $0x20] sm:$0xff] %v1804
      %s1810 = smul.u32 5, %s20
      %p1811 = scmp.lt.s32.totalorder %s19, 1
      %s1812 = scalar_select %p1811, %s19, 1
      %p1813 = scmp.lt.s32.totalorder %s1810, 4
      %s1814 = scalar_select %p1813, %s1810, 4
      %s1815 = smul.addr %s1812, 5
      %s1816 = sadd.s32 %s1814, %s1815
      %s1817 = smul.addr %s1816, 8
      %s1818 = scalar_lea.vmem %s4, %s1817
      // Predicated region
      $region37: #{conv_norm_forward.1} parent=35 // pred_check
        %p1819 = pneg %p149
      $region38: #{conv_norm_forward.1} parent=35 // pred_check_branch
        %1821 = sbr.rel (%p1819) target = $region40
      $region39: #{conv_norm_forward.1} parent=35 // pred_region
        %s1822 = smul.u32 5, %s20
      $region40: #{conv_norm_forward.1} parent=35 // pred_fallthru
        _
    $region36: #{conv_norm_forward.1} parent=5 // pred_fallthru
      _
    %p1823 = scmp.le.s32.totalorder 2, %s10
    // Predicated region
    $region41: #{conv_norm_forward.1} parent=5 // pred_check
      %p1824 = pneg %p1823
    $region42: #{conv_norm_forward.1} parent=5 // pred_check_branch
      %1826 = sbr.rel (%p1824) target = $region44
    $region43: #{conv_norm_forward.1} parent=5 // pred_region
      %s1827 = ssub.s32 %s10, 2
      // Predicated region
      $region45: #{conv_norm_forward.1} parent=43 // pred_check
        %p1828 = pneg %p155
      $region46: #{conv_norm_forward.1} parent=43 // pred_check_branch
        %1830 = sbr.rel (%p1828) target = $region48
      $region47: #{conv_norm_forward.1} parent=43 // pred_region
        %s1831 = smul.u32 5, %s22
        %p1832 = scmp.lt.s32.totalorder %s21, 1
        %s1833 = scalar_select %p1832, %s21, 1
        %p1834 = scmp.lt.s32.totalorder %s1831, 4
        %s1835 = scalar_select %p1834, %s1831, 4
        %s1836 = smul.addr %s1833, 5
        %s1837 = sadd.s32 %s1835, %s1836
        %s1838 = smul.addr %s1837, 8
        %s1839 = scalar_lea.vmem %s4, %s1838
      $region48: #{conv_norm_forward.1} parent=43 // pred_fallthru
        _
    $region44: #{conv_norm_forward.1} parent=5 // pred_fallthru
      _
  $region6: #{conv_norm_forward.1} parent=0 // loop_footer
    %s14 = sadd.s32 1, %s10
  $region7: #{conv_norm_forward.1} parent=0 // loop_footer_branch
    %9 = sbr.rel target = $region3
  $region8: #{conv_norm_forward.1} parent=0 // loop_exit
    _

</llo_original>
